<compile_context>
chip_gen: v7x
topology: tpu7x:2x2x1
jax: 0.10.0
libtpu: 0.0.40
codegen_flags: <defaults>
</compile_context>

<pallas_src>
import functools

import jax
import jax.numpy as jnp
from jax.experimental import pallas as pl
from jax.experimental.pallas import tpu as pltpu


def _round_up(x, m):
    return (x + m - 1) // m * m


def _stride0_broadcast_supported():
    """Probe whether pl.ds accepts stride=0 (sublane-broadcast load)."""
    try:
        pl.ds(0, 8, stride=0)
        return True
    except Exception:
        return False


_STRIDE0_BROADCAST_OK = _stride0_broadcast_supported()


def _num_tensorcores():
    """TensorCores sharing the 'parallel' grid axis on one chip.

    1 on v5e/v6e, 2 on v7x (and v3/v4 megacore).  Only affects tiling, never
    correctness, so every probe is best-effort.
    """
    try:
        info = pltpu.get_tpu_info()
        for attr in ("num_cores", "num_tensorcores", "tensorcores_per_chip",
                     "core_count"):
            v = getattr(info, attr, None)
            if isinstance(v, int) and v in (1, 2):
                return v
    except Exception:
        pass
    try:
        kind = jax.devices()[0].device_kind.lower()
        if any(s in kind for s in ("v3", "v4", "v7", "7x")):
            return 2
    except Exception:
        pass
    return 1


def _choose_tiling(n, num_tc, max_tile=4096):
    """Pick (n_pad, tile_m): minimal 128-padding, tile_m divides n_pad.

    Single-TC chips: one tile covers the whole (padded) batch when it fits in
    max_tile rows (grid=(1,)).  2-TC chips: keep an even number of grid steps
    so the 'parallel' axis splits across both TensorCores.
    """
    n128 = max(128, _round_up(n, 128))
    nb = n128 // 128                       # number of 128-row blocks
    if num_tc >= 2 and nb >= 2 and nb % 2 != 0:
        nb += 1                            # one extra block for an even split
    max_tb = max(1, max_tile // 128)
    best_tb = 1
    for tb in range(1, min(nb, max_tb) + 1):
        if nb % tb:
            continue
        steps = nb // tb
        if num_tc >= 2 and nb >= 2 and steps % 2 != 0:
            continue                       # keep grid a multiple of 2 on v7x
        best_tb = tb
    return nb * 128, best_tb * 128


def _pinn_kernel(x_ref, w_in_t_ref, b_in_t_ref, w_mid_t_ref, b_mid_t_ref,
                 w_out_ref, b_out_ref, o_ref, *, num_middle, broadcast_load,
                 use_bf16):
    # x_ref:       (2, TM)    batch tile, batch on lanes
    # w_in_t_ref:  (H, 2)     transposed input-layer weight
    # b_in_t_ref:  (H, 1)
    # w_mid_t_ref: (M, H, H)  per-layer transposed weights (out, in)
    # b_mid_t_ref: (M, H, 1)
    # w_out_ref:   (H, 1)
    # b_out_ref:   (1, 1)     SMEM scalar
    # o_ref:       (1, TM)
    w_in_t = w_in_t_ref[...]
    hidden = w_in_t.shape[0]

    if broadcast_load:
        # Stride-0 sublane-broadcast loads: each input row arrives already
        # replicated across H sublanes (done in the vld slot, frees the VPU).
        x0 = x_ref[pl.ds(0, hidden, stride=0), :]        # (H, TM)
        x1 = x_ref[pl.ds(1, hidden, stride=0), :]        # (H, TM)
    else:
        x = x_ref[...]
        x0 = x[0:1, :]
        x1 = x[1:2, :]

    # Input layer: K=2 contraction as two broadcast FMAs on the VPU.
    h = jnp.tanh(w_in_t[:, 0:1] * x0 + w_in_t[:, 1:2] * x1
                 + b_in_t_ref[...])                      # (H, TM)

    # Middle layers: (H, H) @ (H, TM) on the MXU, statically unrolled.
    dot_dtype = jnp.bfloat16 if use_bf16 else jnp.float32
    for i in range(num_middle):
        z = jnp.dot(w_mid_t_ref[i].astype(dot_dtype), h.astype(dot_dtype),
                    preferred_element_type=jnp.float32)
        h = jnp.tanh(z + b_mid_t_ref[i])

    # Output layer: N=1 -> weighted sublane reduction, lane-dense store.
    o_ref[...] = (jnp.sum(h * w_out_ref[...], axis=0, keepdims=True)
                  + b_out_ref[0, 0])


def prepare_pinn_params(params):
    """One-time layout plumbing: transpose / cast / reshape the weights.

    Call this once (outside the training/eval loop) so the per-call wrapper
    never re-runs these XLA ops on the hot path.
    params: w_in (2,H), b_in (1,H), w_mid (M,H,H), b_mid (M,1,H),
            w_out (H,1), b_out (1,1)   (oriented for  y = x @ W + b).
    """
    w_in_t = jnp.asarray(params["w_in"], jnp.float32).T              # (H, 2)
    b_in_t = jnp.asarray(params["b_in"], jnp.float32).reshape(-1, 1)  # (H, 1)
    hidden = int(w_in_t.shape[0])

    w_mid = jnp.asarray(params["w_mid"], jnp.float32)
    b_mid = jnp.asarray(params["b_mid"], jnp.float32)
    num_middle = int(w_mid.shape[0])
    if num_middle == 0:
        # Guard (num_hidden == 1): zero-sized leading block dims are not
        # allowed, keep a dummy layer the unrolled loop never executes.
        w_mid = jnp.zeros((1, hidden, hidden), jnp.float32)
        b_mid = jnp.zeros((1, 1, hidden), jnp.float32)
    w_mid_t = jnp.swapaxes(w_mid, 1, 2)                              # (M, H, H)
    b_mid_t = jnp.swapaxes(b_mid, 1, 2)                              # (M, H, 1)

    w_out = jnp.asarray(params["w_out"], jnp.float32)                # (H, 1)
    b_out = jnp.asarray(params["b_out"], jnp.float32).reshape(1, 1)  # (1, 1)
    return {
        "w_in_t": w_in_t, "b_in_t": b_in_t,
        "w_mid_t": w_mid_t, "b_mid_t": b_mid_t,
        "w_out": w_out, "b_out": b_out,
        "num_middle": num_middle, "hidden": hidden,
    }


def pinn_forward(t, params, *, max_tile=4096, use_bf16=False):
    """Pallas implementation of PINN.forward.

    t: any array whose reshape to (-1, 2) is valid (rows are (x, t) points).
    params: either raw params (see prepare_pinn_params) or an already
            prepared dict (preferred: prepare once, reuse per call).
    Returns (N, 1) float32.
    """
    prepared = params if "w_in_t" in params else prepare_pinn_params(params)

    x = jnp.asarray(t, jnp.float32).reshape(-1, 2)
    n = x.shape[0]

    num_tc = _num_tensorcores()
    n_pad, tile_m = _choose_tiling(n, num_tc, max_tile)
    if n_pad != n:
        x = jnp.pad(x, ((0, n_pad - n), (0, 0)))
    x_t = x.T                                                        # (2, n_pad)

    hidden = prepared["hidden"]
    num_middle = prepared["num_middle"]
    m_blk = prepared["w_mid_t"].shape[0]

    def call(broadcast_load):
        kernel = functools.partial(
            _pinn_kernel, num_middle=num_middle,
            broadcast_load=broadcast_load, use_bf16=use_bf16)
        return pl.pallas_call(
            kernel,
            out_shape=jax.ShapeDtypeStruct((1, n_pad), jnp.float32),
            grid_spec=pltpu.PrefetchScalarGridSpec(
                num_scalar_prefetch=0,
                grid=(n_pad // tile_m,),
                in_specs=[
                    # batch tile of input points (batch on lanes)
                    pl.BlockSpec((2, tile_m), lambda i: (0, i)),
                    # Weight / bias tensors: constant index_map -> the
                    # pipeline only fetches them on the first grid step.
                    pl.BlockSpec((hidden, 2), lambda i: (0, 0)),
                    pl.BlockSpec((hidden, 1), lambda i: (0, 0)),
                    pl.BlockSpec((m_blk, hidden, hidden), lambda i: (0, 0, 0)),
                    pl.BlockSpec((m_blk, hidden, 1), lambda i: (0, 0, 0)),
                    pl.BlockSpec((hidden, 1), lambda i: (0, 0)),
                    # scalar output bias lives in SMEM
                    pl.BlockSpec(memory_space=pltpu.MemorySpace.SMEM),
                ],
                out_specs=pl.BlockSpec((1, tile_m), lambda i: (0, i)),
            ),
            compiler_params=pltpu.CompilerParams(
                dimension_semantics=("parallel",)),
        )(x_t, prepared["w_in_t"], prepared["b_in_t"], prepared["w_mid_t"],
          prepared["b_mid_t"], prepared["w_out"], prepared["b_out"])

    if _STRIDE0_BROADCAST_OK:
        try:
            out = call(True)
        except Exception:
            out = call(False)   # fallback: in-register broadcast
    else:
        out = call(False)

    return out.reshape(-1, 1)[:n]


def init_pinn_params(key, num_hidden, dim_hidden):
    """Deterministic xavier-uniform weights, zero biases (as in init_weights)."""
    num_middle = num_hidden - 1

    def xavier(key, shape):
        fan_in, fan_out = shape[-2], shape[-1]
        bound = jnp.sqrt(6.0 / (fan_in + fan_out))
        return jax.random.uniform(key, shape, jnp.float32, -bound, bound)

    k_in, k_mid, k_out = jax.random.split(key, 3)
    return {
        "w_in": xavier(k_in, (2, dim_hidden)),
        "b_in": jnp.zeros((1, dim_hidden), jnp.float32),
        "w_mid": xavier(k_mid, (num_middle, dim_hidden, dim_hidden)),
        "b_mid": jnp.zeros((num_middle, 1, dim_hidden), jnp.float32),
        "w_out": xavier(k_out, (dim_hidden, 1)),
        "b_out": jnp.zeros((1, 1), jnp.float32),
    }


def pinn_forward_ref(t, params):
    """Pure-JAX reference for correctness checking."""
    x = jnp.asarray(t, jnp.float32).reshape(-1, 2)
    h = jnp.tanh(x @ params["w_in"] + params["b_in"])
    for i in range(params["w_mid"].shape[0]):
        h = jnp.tanh(h @ params["w_mid"][i] + params["b_mid"][i])
    return h @ params["w_out"] + params["b_out"]


if __name__ == "__main__":
    key = jax.random.PRNGKey(0)
    k_param, k_data = jax.random.split(key)

    num_hidden = 3     # 2 middle layers
    dim_hidden = 32
    n_points = 1024    # (x, t) points

    params = init_pinn_params(k_param, num_hidden, dim_hidden)
    prepared = prepare_pinn_params(params)   # one-time layout plumbing

    t_pts = jax.random.uniform(k_data, (n_points, 2), jnp.float32, -1.0, 1.0)

    out = jax.block_until_ready(pinn_forward(t_pts, prepared))
    ref = pinn_forward_ref(t_pts, params)
    assert out.shape == (n_points, 1)
    assert jnp.allclose(out, ref, atol=2e-5, rtol=1e-5), float(
        jnp.max(jnp.abs(out - ref)))

    # Odd, non-128-multiple batch (exercises minimal padding + tail slice).
    t_small = jax.random.uniform(jax.random.PRNGKey(1), (37, 2),
                                 jnp.float32, -1.0, 1.0)
    out_small = jax.block_until_ready(pinn_forward(t_small, prepared))
    ref_small = pinn_forward_ref(t_small, params)
    assert jnp.allclose(out_small, ref_small, atol=2e-5, rtol=1e-5)

    # num_hidden=1 edge case (zero middle layers).
    params1 = init_pinn_params(k_param, 1, dim_hidden)
    prep1 = prepare_pinn_params(params1)
    out1 = jax.block_until_ready(pinn_forward(t_small, prep1))
    ref1 = pinn_forward_ref(t_small, params1)
    assert jnp.allclose(out1, ref1, atol=2e-5, rtol=1e-5)

    print("KERNEL_OK")
</pallas_src>

<mosaic_0001>
module attributes {stable_mosaic.version = 11 : i64} {
  func.func @_pinn_kernel(%arg0: i32, %arg1: memref<2x1024xf32, #tpu.memory_space<vmem>>, %arg2: memref<32x2xf32, #tpu.memory_space<vmem>>, %arg3: memref<32x1xf32, #tpu.memory_space<vmem>>, %arg4: memref<2x32x32xf32, #tpu.memory_space<vmem>>, %arg5: memref<2x32x1xf32, #tpu.memory_space<vmem>>, %arg6: memref<32x1xf32, #tpu.memory_space<vmem>>, %arg7: memref<1x1xf32, #tpu.memory_space<smem>>, %arg8: memref<1x1024xf32, #tpu.memory_space<vmem>>) attributes {dimension_semantics = [#tpu.dimension_semantics<parallel>], iteration_bounds = array<i64: 1>, scalar_prefetch = 0 : i64, scratch_operands = 0 : i64, tpu.core_type = #tpu.core_type<tc>, window_params = [{transform_indices = @transform_0, window_bounds = array<i64: 2, 1024>}, {pipeline_mode = #tpu.pipeline_mode<synchronous>, transform_indices = @transform_1, window_bounds = array<i64: 32, 2>}, {pipeline_mode = #tpu.pipeline_mode<synchronous>, transform_indices = @transform_2, window_bounds = array<i64: 32, 1>}, {pipeline_mode = #tpu.pipeline_mode<synchronous>, transform_indices = @transform_3, window_bounds = array<i64: 2, 32, 32>}, {pipeline_mode = #tpu.pipeline_mode<synchronous>, transform_indices = @transform_4, window_bounds = array<i64: 2, 32, 1>}, {pipeline_mode = #tpu.pipeline_mode<synchronous>, transform_indices = @transform_5, window_bounds = array<i64: 32, 1>}, {transform_indices = @transform_6, window_bounds = array<i64: 1, 1>}, {transform_indices = @transform_7, window_bounds = array<i64: 1, 1024>}]} {
    %c0 = arith.constant 0 : index
    %c0_0 = arith.constant 0 : index
    %0 = vector.load %arg2[%c0, %c0_0] : memref<32x2xf32, #tpu.memory_space<vmem>>, vector<32x2xf32>
    %c0_1 = arith.constant 0 : index
    %c0_2 = arith.constant 0 : index
    %1 = tpu.strided_load %arg1[%c0_1, %c0_2] {strides = array<i32: 0, 1>} : memref<2x1024xf32, #tpu.memory_space<vmem>>, vector<32x1024xf32>
    %c1 = arith.constant 1 : index
    %c0_3 = arith.constant 0 : index
    %2 = tpu.strided_load %arg1[%c1, %c0_3] {strides = array<i32: 0, 1>} : memref<2x1024xf32, #tpu.memory_space<vmem>>, vector<32x1024xf32>
    %3 = vector.extract_strided_slice %0 {offsets = [0, 0], sizes = [32, 1], strides = [1, 1]} : vector<32x2xf32> to vector<32x1xf32>
    %4 = vector.broadcast %3 : vector<32x1xf32> to vector<32x1024xf32>
    %5 = arith.mulf %4, %1 : vector<32x1024xf32>
    %6 = vector.extract_strided_slice %0 {offsets = [0, 1], sizes = [32, 1], strides = [1, 1]} : vector<32x2xf32> to vector<32x1xf32>
    %7 = vector.broadcast %6 : vector<32x1xf32> to vector<32x1024xf32>
    %8 = arith.mulf %7, %2 : vector<32x1024xf32>
    %9 = arith.addf %5, %8 : vector<32x1024xf32>
    %c0_4 = arith.constant 0 : index
    %c0_5 = arith.constant 0 : index
    %10 = vector.load %arg3[%c0_4, %c0_5] : memref<32x1xf32, #tpu.memory_space<vmem>>, vector<32x1xf32>
    %11 = vector.broadcast %10 : vector<32x1xf32> to vector<32x1024xf32>
    %12 = arith.addf %9, %11 : vector<32x1024xf32>
    %13 = math.tanh %12 : vector<32x1024xf32>
    %c0_6 = arith.constant 0 : index
    %c0_7 = arith.constant 0 : index
    %c0_8 = arith.constant 0 : index
    %14 = vector.load %arg4[%c0_6, %c0_7, %c0_8] : memref<2x32x32xf32, #tpu.memory_space<vmem>>, vector<1x32x32xf32>
    %15 = vector.shape_cast %14 : vector<1x32x32xf32> to vector<32x32xf32>
    %cst = arith.constant dense<0.000000e+00> : vector<32x1024xf32>
    %16 = tpu.matmul %15, %13, %cst {dimension_numbers = #tpu.dot_dimension_numbers<[1], [0], [0], [1], [0, 0, 1, 1], [], []>} : vector<32x32xf32>, vector<32x1024xf32>, vector<32x1024xf32> -> vector<32x1024xf32>
    %c0_9 = arith.constant 0 : index
    %c0_10 = arith.constant 0 : index
    %c0_11 = arith.constant 0 : index
    %17 = vector.load %arg5[%c0_9, %c0_10, %c0_11] : memref<2x32x1xf32, #tpu.memory_space<vmem>>, vector<1x32x1xf32>
    %18 = vector.shape_cast %17 : vector<1x32x1xf32> to vector<32x1xf32>
    %19 = vector.broadcast %18 : vector<32x1xf32> to vector<32x1024xf32>
    %20 = arith.addf %16, %19 : vector<32x1024xf32>
    %21 = math.tanh %20 : vector<32x1024xf32>
    %c1_12 = arith.constant 1 : index
    %c0_13 = arith.constant 0 : index
    %c0_14 = arith.constant 0 : index
    %22 = vector.load %arg4[%c1_12, %c0_13, %c0_14] : memref<2x32x32xf32, #tpu.memory_space<vmem>>, vector<1x32x32xf32>
    %23 = vector.shape_cast %22 : vector<1x32x32xf32> to vector<32x32xf32>
    %cst_15 = arith.constant dense<0.000000e+00> : vector<32x1024xf32>
    %24 = tpu.matmul %23, %21, %cst_15 {dimension_numbers = #tpu.dot_dimension_numbers<[1], [0], [0], [1], [0, 0, 1, 1], [], []>} : vector<32x32xf32>, vector<32x1024xf32>, vector<32x1024xf32> -> vector<32x1024xf32>
    %c1_16 = arith.constant 1 : index
    %c0_17 = arith.constant 0 : index
    %c0_18 = arith.constant 0 : index
    %25 = vector.load %arg5[%c1_16, %c0_17, %c0_18] : memref<2x32x1xf32, #tpu.memory_space<vmem>>, vector<1x32x1xf32>
    %26 = vector.shape_cast %25 : vector<1x32x1xf32> to vector<32x1xf32>
    %27 = vector.broadcast %26 : vector<32x1xf32> to vector<32x1024xf32>
    %28 = arith.addf %24, %27 : vector<32x1024xf32>
    %29 = math.tanh %28 : vector<32x1024xf32>
    %c0_19 = arith.constant 0 : index
    %c0_20 = arith.constant 0 : index
    %30 = vector.load %arg6[%c0_19, %c0_20] : memref<32x1xf32, #tpu.memory_space<vmem>>, vector<32x1xf32>
    %31 = vector.broadcast %30 : vector<32x1xf32> to vector<32x1024xf32>
    %32 = arith.mulf %29, %31 : vector<32x1024xf32>
    %cst_21 = arith.constant dense<0.000000e+00> : vector<1024xf32>
    %33 = vector.multi_reduction <add>, %32, %cst_21 [0] : vector<32x1024xf32> to vector<1024xf32>
    %34 = vector.shape_cast %33 : vector<1024xf32> to vector<1x1024xf32>
    %c0_22 = arith.constant 0 : index
    %c0_23 = arith.constant 0 : index
    %35 = memref.load %arg7[%c0_22, %c0_23] : memref<1x1xf32, #tpu.memory_space<smem>>
    %36 = vector.broadcast %35 : f32 to vector<1x1024xf32>
    %37 = arith.addf %34, %36 : vector<1x1024xf32>
    %c0_24 = arith.constant 0 : index
    %c0_25 = arith.constant 0 : index
    %38 = vector.load %arg8[%c0_24, %c0_25] : memref<1x1024xf32, #tpu.memory_space<vmem>>, vector<1x1024xf32>
    tpu.vector_store %arg8[%c0_24, %c0_25], %37 {strides = array<i32>} : memref<1x1024xf32, #tpu.memory_space<vmem>>, vector<1x1024xf32>,
    return
  }
  func.func @transform_0(%arg0: i32) -> (i32, i32) {
    %c0_i32 = arith.constant 0 : i32
    %c0_i32_0 = arith.constant 0 : i32
    return %c0_i32, %arg0 : i32, i32
  }
  func.func @transform_1(%arg0: i32) -> (i32, i32) {
    %c0_i32 = arith.constant 0 : i32
    %c0_i32_0 = arith.constant 0 : i32
    %c0_i32_1 = arith.constant 0 : i32
    return %c0_i32, %c0_i32_0 : i32, i32
  }
  func.func @transform_2(%arg0: i32) -> (i32, i32) {
    %c0_i32 = arith.constant 0 : i32
    %c0_i32_0 = arith.constant 0 : i32
    %c0_i32_1 = arith.constant 0 : i32
    return %c0_i32, %c0_i32_0 : i32, i32
  }
  func.func @transform_3(%arg0: i32) -> (i32, i32, i32) {
    %c0_i32 = arith.constant 0 : i32
    %c0_i32_0 = arith.constant 0 : i32
    %c0_i32_1 = arith.constant 0 : i32
    %c0_i32_2 = arith.constant 0 : i32
    return %c0_i32, %c0_i32_0, %c0_i32_1 : i32, i32, i32
  }
  func.func @transform_4(%arg0: i32) -> (i32, i32, i32) {
    %c0_i32 = arith.constant 0 : i32
    %c0_i32_0 = arith.constant 0 : i32
    %c0_i32_1 = arith.constant 0 : i32
    %c0_i32_2 = arith.constant 0 : i32
    return %c0_i32, %c0_i32_0, %c0_i32_1 : i32, i32, i32
  }
  func.func @transform_5(%arg0: i32) -> (i32, i32) {
    %c0_i32 = arith.constant 0 : i32
    %c0_i32_0 = arith.constant 0 : i32
    %c0_i32_1 = arith.constant 0 : i32
    return %c0_i32, %c0_i32_0 : i32, i32
  }
  func.func @transform_6(%arg0: i32) -> (i32, i32) {
    %c0_i32 = arith.constant 0 : i32
    %c0_i32_0 = arith.constant 0 : i32
    %c0_i32_1 = arith.constant 0 : i32
    return %c0_i32, %c0_i32_0 : i32, i32
  }
  func.func @transform_7(%arg0: i32) -> (i32, i32) {
    %c0_i32 = arith.constant 0 : i32
    %c0_i32_0 = arith.constant 0 : i32
    return %c0_i32, %arg0 : i32, i32
  }
}

module attributes {stable_mosaic.version = 11 : i64} {
  func.func @_pinn_kernel(%arg0: i32, %arg1: memref<2x1024xf32, #tpu.memory_space<vmem>>, %arg2: memref<32x2xf32, #tpu.memory_space<vmem>>, %arg3: memref<32x1xf32, #tpu.memory_space<vmem>>, %arg4: memref<2x32x32xf32, #tpu.memory_space<vmem>>, %arg5: memref<2x32x1xf32, #tpu.memory_space<vmem>>, %arg6: memref<32x1xf32, #tpu.memory_space<vmem>>, %arg7: memref<1x1xf32, #tpu.memory_space<smem>>, %arg8: memref<1x1024xf32, #tpu.memory_space<vmem>>) attributes {dimension_semantics = [#tpu.dimension_semantics<parallel>], iteration_bounds = array<i64: 1>, scalar_prefetch = 0 : i64, scratch_operands = 0 : i64, tpu.core_type = #tpu.core_type<tc>, window_params = [{transform_indices = @transform_0, window_bounds = array<i64: 2, 1024>}, {pipeline_mode = #tpu.pipeline_mode<synchronous>, transform_indices = @transform_1, window_bounds = array<i64: 32, 2>}, {pipeline_mode = #tpu.pipeline_mode<synchronous>, transform_indices = @transform_2, window_bounds = array<i64: 32, 1>}, {pipeline_mode = #tpu.pipeline_mode<synchronous>, transform_indices = @transform_3, window_bounds = array<i64: 2, 32, 32>}, {pipeline_mode = #tpu.pipeline_mode<synchronous>, transform_indices = @transform_4, window_bounds = array<i64: 2, 32, 1>}, {pipeline_mode = #tpu.pipeline_mode<synchronous>, transform_indices = @transform_5, window_bounds = array<i64: 32, 1>}, {transform_indices = @transform_6, window_bounds = array<i64: 1, 1>}, {transform_indices = @transform_7, window_bounds = array<i64: 1, 1024>}]} {
    %c0 = arith.constant 0 : index
    %c0_0 = arith.constant 0 : index
    %0 = vector.load %arg2[%c0, %c0_0] : memref<32x2xf32, #tpu.memory_space<vmem>>, vector<32x2xf32>
    %c0_1 = arith.constant 0 : index
    %c0_2 = arith.constant 0 : index
    %1 = vector.load %arg1[%c0_1, %c0_2] : memref<2x1024xf32, #tpu.memory_space<vmem>>, vector<2x1024xf32>
    %2 = vector.extract_strided_slice %1 {offsets = [0, 0], sizes = [1, 1024], strides = [1, 1]} : vector<2x1024xf32> to vector<1x1024xf32>
    %3 = vector.extract_strided_slice %1 {offsets = [1, 0], sizes = [1, 1024], strides = [1, 1]} : vector<2x1024xf32> to vector<1x1024xf32>
    %4 = vector.extract_strided_slice %0 {offsets = [0, 0], sizes = [32, 1], strides = [1, 1]} : vector<32x2xf32> to vector<32x1xf32>
    %5 = vector.broadcast %4 : vector<32x1xf32> to vector<32x1024xf32>
    %6 = vector.broadcast %2 : vector<1x1024xf32> to vector<32x1024xf32>
    %7 = arith.mulf %5, %6 : vector<32x1024xf32>
    %8 = vector.extract_strided_slice %0 {offsets = [0, 1], sizes = [32, 1], strides = [1, 1]} : vector<32x2xf32> to vector<32x1xf32>
    %9 = vector.broadcast %8 : vector<32x1xf32> to vector<32x1024xf32>
    %10 = vector.broadcast %3 : vector<1x1024xf32> to vector<32x1024xf32>
    %11 = arith.mulf %9, %10 : vector<32x1024xf32>
    %12 = arith.addf %7, %11 : vector<32x1024xf32>
    %c0_3 = arith.constant 0 : index
    %c0_4 = arith.constant 0 : index
    %13 = vector.load %arg3[%c0_3, %c0_4] : memref<32x1xf32, #tpu.memory_space<vmem>>, vector<32x1xf32>
    %14 = vector.broadcast %13 : vector<32x1xf32> to vector<32x1024xf32>
    %15 = arith.addf %12, %14 : vector<32x1024xf32>
    %16 = math.tanh %15 : vector<32x1024xf32>
    %c0_5 = arith.constant 0 : index
    %c0_6 = arith.constant 0 : index
    %c0_7 = arith.constant 0 : index
    %17 = vector.load %arg4[%c0_5, %c0_6, %c0_7] : memref<2x32x32xf32, #tpu.memory_space<vmem>>, vector<1x32x32xf32>
    %18 = vector.shape_cast %17 : vector<1x32x32xf32> to vector<32x32xf32>
    %cst = arith.constant dense<0.000000e+00> : vector<32x1024xf32>
    %19 = tpu.matmul %18, %16, %cst {dimension_numbers = #tpu.dot_dimension_numbers<[1], [0], [0], [1], [0, 0, 1, 1], [], []>} : vector<32x32xf32>, vector<32x1024xf32>, vector<32x1024xf32> -> vector<32x1024xf32>
    %c0_8 = arith.constant 0 : index
    %c0_9 = arith.constant 0 : index
    %c0_10 = arith.constant 0 : index
    %20 = vector.load %arg5[%c0_8, %c0_9, %c0_10] : memref<2x32x1xf32, #tpu.memory_space<vmem>>, vector<1x32x1xf32>
    %21 = vector.shape_cast %20 : vector<1x32x1xf32> to vector<32x1xf32>
    %22 = vector.broadcast %21 : vector<32x1xf32> to vector<32x1024xf32>
    %23 = arith.addf %19, %22 : vector<32x1024xf32>
    %24 = math.tanh %23 : vector<32x1024xf32>
    %c1 = arith.constant 1 : index
    %c0_11 = arith.constant 0 : index
    %c0_12 = arith.constant 0 : index
    %25 = vector.load %arg4[%c1, %c0_11, %c0_12] : memref<2x32x32xf32, #tpu.memory_space<vmem>>, vector<1x32x32xf32>
    %26 = vector.shape_cast %25 : vector<1x32x32xf32> to vector<32x32xf32>
    %cst_13 = arith.constant dense<0.000000e+00> : vector<32x1024xf32>
    %27 = tpu.matmul %26, %24, %cst_13 {dimension_numbers = #tpu.dot_dimension_numbers<[1], [0], [0], [1], [0, 0, 1, 1], [], []>} : vector<32x32xf32>, vector<32x1024xf32>, vector<32x1024xf32> -> vector<32x1024xf32>
    %c1_14 = arith.constant 1 : index
    %c0_15 = arith.constant 0 : index
    %c0_16 = arith.constant 0 : index
    %28 = vector.load %arg5[%c1_14, %c0_15, %c0_16] : memref<2x32x1xf32, #tpu.memory_space<vmem>>, vector<1x32x1xf32>
    %29 = vector.shape_cast %28 : vector<1x32x1xf32> to vector<32x1xf32>
    %30 = vector.broadcast %29 : vector<32x1xf32> to vector<32x1024xf32>
    %31 = arith.addf %27, %30 : vector<32x1024xf32>
    %32 = math.tanh %31 : vector<32x1024xf32>
    %c0_17 = arith.constant 0 : index
    %c0_18 = arith.constant 0 : index
    %33 = vector.load %arg6[%c0_17, %c0_18] : memref<32x1xf32, #tpu.memory_space<vmem>>, vector<32x1xf32>
    %34 = vector.broadcast %33 : vector<32x1xf32> to vector<32x1024xf32>
    %35 = arith.mulf %32, %34 : vector<32x1024xf32>
    %cst_19 = arith.constant dense<0.000000e+00> : vector<1024xf32>
    %36 = vector.multi_reduction <add>, %35, %cst_19 [0] : vector<32x1024xf32> to vector<1024xf32>
    %37 = vector.shape_cast %36 : vector<1024xf32> to vector<1x1024xf32>
    %c0_20 = arith.constant 0 : index
    %c0_21 = arith.constant 0 : index
    %38 = memref.load %arg7[%c0_20, %c0_21] : memref<1x1xf32, #tpu.memory_space<smem>>
    %39 = vector.broadcast %38 : f32 to vector<1x1024xf32>
    %40 = arith.addf %37, %39 : vector<1x1024xf32>
    %c0_22 = arith.constant 0 : index
    %c0_23 = arith.constant 0 : index
    %41 = vector.load %arg8[%c0_22, %c0_23] : memref<1x1024xf32, #tpu.memory_space<vmem>>, vector<1x1024xf32>
    tpu.vector_store %arg8[%c0_22, %c0_23], %40 {strides = array<i32>} : memref<1x1024xf32, #tpu.memory_space<vmem>>, vector<1x1024xf32>,
    return
  }
  func.func @transform_0(%arg0: i32) -> (i32, i32) {
    %c0_i32 = arith.constant 0 : i32
    %c0_i32_0 = arith.constant 0 : i32
    return %c0_i32, %arg0 : i32, i32
  }
  func.func @transform_1(%arg0: i32) -> (i32, i32) {
    %c0_i32 = arith.constant 0 : i32
    %c0_i32_0 = arith.constant 0 : i32
    %c0_i32_1 = arith.constant 0 : i32
    return %c0_i32, %c0_i32_0 : i32, i32
  }
  func.func @transform_2(%arg0: i32) -> (i32, i32) {
    %c0_i32 = arith.constant 0 : i32
    %c0_i32_0 = arith.constant 0 : i32
    %c0_i32_1 = arith.constant 0 : i32
    return %c0_i32, %c0_i32_0 : i32, i32
  }
  func.func @transform_3(%arg0: i32) -> (i32, i32, i32) {
    %c0_i32 = arith.constant 0 : i32
    %c0_i32_0 = arith.constant 0 : i32
    %c0_i32_1 = arith.constant 0 : i32
    %c0_i32_2 = arith.constant 0 : i32
    return %c0_i32, %c0_i32_0, %c0_i32_1 : i32, i32, i32
  }
  func.func @transform_4(%arg0: i32) -> (i32, i32, i32) {
    %c0_i32 = arith.constant 0 : i32
    %c0_i32_0 = arith.constant 0 : i32
    %c0_i32_1 = arith.constant 0 : i32
    %c0_i32_2 = arith.constant 0 : i32
    return %c0_i32, %c0_i32_0, %c0_i32_1 : i32, i32, i32
  }
  func.func @transform_5(%arg0: i32) -> (i32, i32) {
    %c0_i32 = arith.constant 0 : i32
    %c0_i32_0 = arith.constant 0 : i32
    %c0_i32_1 = arith.constant 0 : i32
    return %c0_i32, %c0_i32_0 : i32, i32
  }
  func.func @transform_6(%arg0: i32) -> (i32, i32) {
    %c0_i32 = arith.constant 0 : i32
    %c0_i32_0 = arith.constant 0 : i32
    %c0_i32_1 = arith.constant 0 : i32
    return %c0_i32, %c0_i32_0 : i32, i32
  }
  func.func @transform_7(%arg0: i32) -> (i32, i32) {
    %c0_i32 = arith.constant 0 : i32
    %c0_i32_0 = arith.constant 0 : i32
    return %c0_i32, %arg0 : i32, i32
  }
}

</mosaic_0001>

<llo_original>
// kernel: tpu_custom_call.1
$region0: #{tpu_custom_call.1}
  #allocation0 [shape = 'u32[]', space=smem, size = 0x4, offset = 0x4, fixed_abs, tag = 'smem constant byte address 0x4 - core index']
  #allocation1 [shape = 'u32[144,128]{1,0:T(1,128)}', space=vmem, size = 0x12000, scoped, tag = 'internal scratch']
  #allocation2 [shape = 'f32[1,1]{1,0:T(1,128)S(6)}', space=smem, size = 0x200, scoped, tag = 'scoped memory for tpu_custom_call.1']
  %s0 = inlined_call_operand.vmem [shape: f32[2,1024], index: 0, kind: input, shape index: {}]
  %s1 = inlined_call_operand.vmem [shape: f32[32,2], index: 1, kind: input, shape index: {}]
  %s2 = inlined_call_operand.vmem [shape: f32[32,1], index: 2, kind: input, shape index: {}]
  %s3 = inlined_call_operand.vmem [shape: f32[2,32,32], index: 3, kind: input, shape index: {}]
  %s4 = inlined_call_operand.vmem [shape: f32[2,32,1], index: 4, kind: input, shape index: {}]
  %s5 = inlined_call_operand.vmem [shape: f32[32,1], index: 5, kind: input, shape index: {}]
  %s6 = inlined_call_operand.<no memory space> [shape: f32[1,1], index: 6, kind: input, shape index: {}]
  %s7 = inlined_call_operand.hbm [shape: f32[1,1024], index: 7, kind: output, shape index: {}]
  %s8 = sld [smem:[#allocation0]]
  $region38: #{tpu_custom_call.1} parent=0
    _
  %s10 = ssub.s32 1, %s8
  %s11 = scalar_select 0, %s10, %s8
  %12 = sst [smem:[#allocation2]] %s6
  $region1: #{tpu_custom_call.1} parent=0
    #allocation3 [shape = 'u8[4096]{0}', space=vmem, size = 0x1000, scoped, tag = 'output window, operand 0, single buffered']
    #allocation4 [shape = 's32[1]{0}', space=sflag, size = 0x4, scoped, tag = 'scoped memory for tpu_custom_call.1']
    %13 = vsyncpa [#allocation4], 0
    // Predicated region
    $region2: #{tpu_custom_call.1} parent=1 // pred_check
      _
    $region3: #{tpu_custom_call.1} parent=1 // pred_check_branch
      %15 = sbr.rel (0) target = $region5
    $region4: #{tpu_custom_call.1} parent=1 // pred_region
      _
    $region5: #{tpu_custom_call.1} parent=1 // pred_fallthru
      _
    // Predicated region
    $region6: #{tpu_custom_call.1} parent=1 // pred_check
      _
    $region7: #{tpu_custom_call.1} parent=1 // pred_check_branch
      %17 = sbr.rel (0) target = $region9
    $region8: #{tpu_custom_call.1} parent=1 // pred_region
      _
    $region9: #{tpu_custom_call.1} parent=1 // pred_fallthru
      _
    // Predicated region
    $region10: #{tpu_custom_call.1} parent=1 // pred_check
      _
    $region11: #{tpu_custom_call.1} parent=1 // pred_check_branch
      %19 = sbr.rel (0) target = $region13
    $region12: #{tpu_custom_call.1} parent=1 // pred_region
      _
    $region13: #{tpu_custom_call.1} parent=1 // pred_fallthru
      _
    // Predicated region
    $region14: #{tpu_custom_call.1} parent=1 // pred_check
      _
    $region15: #{tpu_custom_call.1} parent=1 // pred_check_branch
      %21 = sbr.rel (0) target = $region17
    $region16: #{tpu_custom_call.1} parent=1 // pred_region
      _
    $region17: #{tpu_custom_call.1} parent=1 // pred_fallthru
      _
    // Predicated region
    $region18: #{tpu_custom_call.1} parent=1 // pred_check
      _
    $region19: #{tpu_custom_call.1} parent=1 // pred_check_branch
      %23 = sbr.rel (0) target = $region21
    $region20: #{tpu_custom_call.1} parent=1 // pred_region
      _
    $region21: #{tpu_custom_call.1} parent=1 // pred_fallthru
      _
    // Predicated region
    $region22: #{tpu_custom_call.1} parent=1 // pred_check
      _
    $region23: #{tpu_custom_call.1} parent=1 // pred_check_branch
      %25 = sbr.rel (0) target = $region25
    $region24: #{tpu_custom_call.1} parent=1 // pred_region
      _
    $region25: #{tpu_custom_call.1} parent=1 // pred_fallthru
      _
    // Predicated region
    $region26: #{tpu_custom_call.1} parent=1 // pred_check
      _
    $region27: #{tpu_custom_call.1} parent=1 // pred_check_branch
      %27 = sbr.rel (0) target = $region29
    $region28: #{tpu_custom_call.1} parent=1 // pred_region
      _
    $region29: #{tpu_custom_call.1} parent=1 // pred_fallthru
      _
    %v28 = vld [vmem:[%s1] sm:$0xff]
    %v29 = vld [vmem:[%s1 + $0x8] sm:$0xff]
    %v30 = vld [vmem:[%s1 + $0x10] sm:$0xff]
    %v31 = vld [vmem:[%s1 + $0x18] sm:$0xff]
    %v32 = vld [vmem:[%s0] sm:$0xff]
    %v33 = vld [vmem:[%s0 + $0x8] sm:$0xff]
    %35 = vset.pattern.permute.xlu0 0
    %36 = vperm.xlu0 %35, %v28
    %v37 = vpop.permute.xlu0 %36
    %40 = vset.pattern.permute.xlu0 0
    %41 = vperm.xlu0 %40, %v29
    %v42 = vpop.permute.xlu0 %41
    %45 = vset.pattern.permute.xlu0 0
    %46 = vperm.xlu0 %45, %v30
    %v47 = vpop.permute.xlu0 %46
    %50 = vset.pattern.permute.xlu0 0
    %51 = vperm.xlu0 %50, %v31
    %v52 = vpop.permute.xlu0 %51
    %v56 = vlaneseq
    %v57 = vshrl.u32 %v56, 7
    %v58 = vsub.s32 0, %v57
    %v59 = vrot.slane %v32, %v58
    %v60 = vlaneseq
    %v61 = vshrl.u32 %v60, 7
    %v62 = vsub.s32 2, %v61
    %v63 = vrot.slane %v32, %v62
    %v64 = vlaneseq
    %v65 = vshrl.u32 %v64, 7
    %v66 = vsub.s32 4, %v65
    %v67 = vrot.slane %v32, %v66
    %v68 = vlaneseq
    %v69 = vshrl.u32 %v68, 7
    %v70 = vsub.s32 6, %v69
    %v71 = vrot.slane %v32, %v70
    %v72 = vlaneseq
    %v73 = vshrl.u32 %v72, 7
    %v74 = vsub.s32 0, %v73
    %v75 = vrot.slane %v33, %v74
    %v76 = vlaneseq
    %v77 = vshrl.u32 %v76, 7
    %v78 = vsub.s32 2, %v77
    %v79 = vrot.slane %v33, %v78
    %v80 = vlaneseq
    %v81 = vshrl.u32 %v80, 7
    %v82 = vsub.s32 4, %v81
    %v83 = vrot.slane %v33, %v82
    %v84 = vlaneseq
    %v85 = vshrl.u32 %v84, 7
    %v86 = vsub.s32 6, %v85
    %v87 = vrot.slane %v33, %v86
    %v96 = vlaneseq
    %v97 = vshrl.u32 %v96, 7
    %v98 = vsub.s32 0, %v97
    %v99 = vrot.slane %v59, %v98
    %v100 = vlaneseq
    %v101 = vshrl.u32 %v100, 7
    %v102 = vsub.s32 0, %v101
    %v103 = vrot.slane %v63, %v102
    %v104 = vlaneseq
    %v105 = vshrl.u32 %v104, 7
    %v106 = vsub.s32 0, %v105
    %v107 = vrot.slane %v67, %v106
    %v108 = vlaneseq
    %v109 = vshrl.u32 %v108, 7
    %v110 = vsub.s32 0, %v109
    %v111 = vrot.slane %v71, %v110
    %v112 = vlaneseq
    %v113 = vshrl.u32 %v112, 7
    %v114 = vsub.s32 0, %v113
    %v115 = vrot.slane %v75, %v114
    %v116 = vlaneseq
    %v117 = vshrl.u32 %v116, 7
    %v118 = vsub.s32 0, %v117
    %v119 = vrot.slane %v79, %v118
    %v120 = vlaneseq
    %v121 = vshrl.u32 %v120, 7
    %v122 = vsub.s32 0, %v121
    %v123 = vrot.slane %v83, %v122
    %v124 = vlaneseq
    %v125 = vshrl.u32 %v124, 7
    %v126 = vsub.s32 0, %v125
    %v127 = vrot.slane %v87, %v126
    %v128 = vmul.f32 %v37, %v99
    %v129 = vmul.f32 %v37, %v103
    %v130 = vmul.f32 %v37, %v107
    %v131 = vmul.f32 %v37, %v111
    %v132 = vmul.f32 %v37, %v115
    %v133 = vmul.f32 %v37, %v119
    %v134 = vmul.f32 %v37, %v123
    %v135 = vmul.f32 %v37, %v127
    %v136 = vmul.f32 %v42, %v99
    %v137 = vmul.f32 %v42, %v103
    %v138 = vmul.f32 %v42, %v107
    %v139 = vmul.f32 %v42, %v111
    %v140 = vmul.f32 %v42, %v115
    %v141 = vmul.f32 %v42, %v119
    %v142 = vmul.f32 %v42, %v123
    %v143 = vmul.f32 %v42, %v127
    %v144 = vmul.f32 %v47, %v99
    %v145 = vmul.f32 %v47, %v103
    %v146 = vmul.f32 %v47, %v107
    %v147 = vmul.f32 %v47, %v111
    %v148 = vmul.f32 %v47, %v115
    %v149 = vmul.f32 %v47, %v119
    %v150 = vmul.f32 %v47, %v123
    %v151 = vmul.f32 %v47, %v127
    %v152 = vmul.f32 %v52, %v99
    %v153 = vmul.f32 %v52, %v103
    %v154 = vmul.f32 %v52, %v107
    %v155 = vmul.f32 %v52, %v111
    %v156 = vmul.f32 %v52, %v115
    %v157 = vmul.f32 %v52, %v119
    %v158 = vmul.f32 %v52, %v123
    %v159 = vmul.f32 %v52, %v127
    %160 = vset.pattern.permute.xlu0 1
    %161 = vperm.xlu0 %160, %v28
    %v162 = vpop.permute.xlu0 %161
    %164 = vset.pattern.permute.xlu0 1
    %165 = vperm.xlu0 %164, %v29
    %v166 = vpop.permute.xlu0 %165
    %168 = vset.pattern.permute.xlu0 1
    %169 = vperm.xlu0 %168, %v30
    %v170 = vpop.permute.xlu0 %169
    %172 = vset.pattern.permute.xlu0 1
    %173 = vperm.xlu0 %172, %v31
    %v174 = vpop.permute.xlu0 %173
    %v176 = vlaneseq
    %v177 = vshrl.u32 %v176, 7
    %v178 = vsub.s32 1, %v177
    %v179 = vrot.slane %v32, %v178
    %v180 = vlaneseq
    %v181 = vshrl.u32 %v180, 7
    %v182 = vsub.s32 3, %v181
    %v183 = vrot.slane %v32, %v182
    %v184 = vlaneseq
    %v185 = vshrl.u32 %v184, 7
    %v186 = vsub.s32 5, %v185
    %v187 = vrot.slane %v32, %v186
    %v188 = vlaneseq
    %v189 = vshrl.u32 %v188, 7
    %v190 = vsub.s32 7, %v189
    %v191 = vrot.slane %v32, %v190
    %v192 = vlaneseq
    %v193 = vshrl.u32 %v192, 7
    %v194 = vsub.s32 1, %v193
    %v195 = vrot.slane %v33, %v194
    %v196 = vlaneseq
    %v197 = vshrl.u32 %v196, 7
    %v198 = vsub.s32 3, %v197
    %v199 = vrot.slane %v33, %v198
    %v200 = vlaneseq
    %v201 = vshrl.u32 %v200, 7
    %v202 = vsub.s32 5, %v201
    %v203 = vrot.slane %v33, %v202
    %v204 = vlaneseq
    %v205 = vshrl.u32 %v204, 7
    %v206 = vsub.s32 7, %v205
    %v207 = vrot.slane %v33, %v206
    %v216 = vlaneseq
    %v217 = vshrl.u32 %v216, 7
    %v218 = vsub.s32 1, %v217
    %v219 = vrot.slane %v179, %v218
    %v220 = vlaneseq
    %v221 = vshrl.u32 %v220, 7
    %v222 = vsub.s32 1, %v221
    %v223 = vrot.slane %v183, %v222
    %v224 = vlaneseq
    %v225 = vshrl.u32 %v224, 7
    %v226 = vsub.s32 1, %v225
    %v227 = vrot.slane %v187, %v226
    %v228 = vlaneseq
    %v229 = vshrl.u32 %v228, 7
    %v230 = vsub.s32 1, %v229
    %v231 = vrot.slane %v191, %v230
    %v232 = vlaneseq
    %v233 = vshrl.u32 %v232, 7
    %v234 = vsub.s32 1, %v233
    %v235 = vrot.slane %v195, %v234
    %v236 = vlaneseq
    %v237 = vshrl.u32 %v236, 7
    %v238 = vsub.s32 1, %v237
    %v239 = vrot.slane %v199, %v238
    %v240 = vlaneseq
    %v241 = vshrl.u32 %v240, 7
    %v242 = vsub.s32 1, %v241
    %v243 = vrot.slane %v203, %v242
    %v244 = vlaneseq
    %v245 = vshrl.u32 %v244, 7
    %v246 = vsub.s32 1, %v245
    %v247 = vrot.slane %v207, %v246
    %v248 = vmul.f32 %v162, %v219
    %v249 = vmul.f32 %v162, %v223
    %v250 = vmul.f32 %v162, %v227
    %v251 = vmul.f32 %v162, %v231
    %v252 = vmul.f32 %v162, %v235
    %v253 = vmul.f32 %v162, %v239
    %v254 = vmul.f32 %v162, %v243
    %v255 = vmul.f32 %v162, %v247
    %v256 = vmul.f32 %v166, %v219
    %v257 = vmul.f32 %v166, %v223
    %v258 = vmul.f32 %v166, %v227
    %v259 = vmul.f32 %v166, %v231
    %v260 = vmul.f32 %v166, %v235
    %v261 = vmul.f32 %v166, %v239
    %v262 = vmul.f32 %v166, %v243
    %v263 = vmul.f32 %v166, %v247
    %v264 = vmul.f32 %v170, %v219
    %v265 = vmul.f32 %v170, %v223
    %v266 = vmul.f32 %v170, %v227
    %v267 = vmul.f32 %v170, %v231
    %v268 = vmul.f32 %v170, %v235
    %v269 = vmul.f32 %v170, %v239
    %v270 = vmul.f32 %v170, %v243
    %v271 = vmul.f32 %v170, %v247
    %v272 = vmul.f32 %v174, %v219
    %v273 = vmul.f32 %v174, %v223
    %v274 = vmul.f32 %v174, %v227
    %v275 = vmul.f32 %v174, %v231
    %v276 = vmul.f32 %v174, %v235
    %v277 = vmul.f32 %v174, %v239
    %v278 = vmul.f32 %v174, %v243
    %v279 = vmul.f32 %v174, %v247
    %v280 = vadd.f32 %v128, %v248
    %v281 = vadd.f32 %v129, %v249
    %v282 = vadd.f32 %v130, %v250
    %v283 = vadd.f32 %v131, %v251
    %v284 = vadd.f32 %v132, %v252
    %v285 = vadd.f32 %v133, %v253
    %v286 = vadd.f32 %v134, %v254
    %v287 = vadd.f32 %v135, %v255
    %v288 = vadd.f32 %v136, %v256
    %v289 = vadd.f32 %v137, %v257
    %v290 = vadd.f32 %v138, %v258
    %v291 = vadd.f32 %v139, %v259
    %v292 = vadd.f32 %v140, %v260
    %v293 = vadd.f32 %v141, %v261
    %v294 = vadd.f32 %v142, %v262
    %v295 = vadd.f32 %v143, %v263
    %v296 = vadd.f32 %v144, %v264
    %v297 = vadd.f32 %v145, %v265
    %v298 = vadd.f32 %v146, %v266
    %v299 = vadd.f32 %v147, %v267
    %v300 = vadd.f32 %v148, %v268
    %v301 = vadd.f32 %v149, %v269
    %v302 = vadd.f32 %v150, %v270
    %v303 = vadd.f32 %v151, %v271
    %v304 = vadd.f32 %v152, %v272
    %v305 = vadd.f32 %v153, %v273
    %v306 = vadd.f32 %v154, %v274
    %v307 = vadd.f32 %v155, %v275
    %v308 = vadd.f32 %v156, %v276
    %v309 = vadd.f32 %v157, %v277
    %v310 = vadd.f32 %v158, %v278
    %v311 = vadd.f32 %v159, %v279
    %v312 = vld [vmem:[%s2] sm:$0xff]
    %v313 = vld [vmem:[%s2 + $0x8] sm:$0xff]
    %v314 = vld [vmem:[%s2 + $0x10] sm:$0xff]
    %v315 = vld [vmem:[%s2 + $0x18] sm:$0xff]
    %317 = vset.pattern.permute.xlu0 0
    %318 = vperm.xlu0 %317, %v312
    %v319 = vpop.permute.xlu0 %318
    %322 = vset.pattern.permute.xlu0 0
    %323 = vperm.xlu0 %322, %v313
    %v324 = vpop.permute.xlu0 %323
    %327 = vset.pattern.permute.xlu0 0
    %328 = vperm.xlu0 %327, %v314
    %v329 = vpop.permute.xlu0 %328
    %332 = vset.pattern.permute.xlu0 0
    %333 = vperm.xlu0 %332, %v315
    %v334 = vpop.permute.xlu0 %333
    %v336 = vadd.f32 %v280, %v319
    %v337 = vadd.f32 %v281, %v319
    %v338 = vadd.f32 %v282, %v319
    %v339 = vadd.f32 %v283, %v319
    %v340 = vadd.f32 %v284, %v319
    %v341 = vadd.f32 %v285, %v319
    %v342 = vadd.f32 %v286, %v319
    %v343 = vadd.f32 %v287, %v319
    %v344 = vadd.f32 %v288, %v324
    %v345 = vadd.f32 %v289, %v324
    %v346 = vadd.f32 %v290, %v324
    %v347 = vadd.f32 %v291, %v324
    %v348 = vadd.f32 %v292, %v324
    %v349 = vadd.f32 %v293, %v324
    %v350 = vadd.f32 %v294, %v324
    %v351 = vadd.f32 %v295, %v324
    %v352 = vadd.f32 %v296, %v329
    %v353 = vadd.f32 %v297, %v329
    %v354 = vadd.f32 %v298, %v329
    %v355 = vadd.f32 %v299, %v329
    %v356 = vadd.f32 %v300, %v329
    %v357 = vadd.f32 %v301, %v329
    %v358 = vadd.f32 %v302, %v329
    %v359 = vadd.f32 %v303, %v329
    %v360 = vadd.f32 %v304, %v334
    %v361 = vadd.f32 %v305, %v334
    %v362 = vadd.f32 %v306, %v334
    %v363 = vadd.f32 %v307, %v334
    %v364 = vadd.f32 %v308, %v334
    %v365 = vadd.f32 %v309, %v334
    %v366 = vadd.f32 %v310, %v334
    %v367 = vadd.f32 %v311, %v334
    %v368 = vtanh.pop %v336
    %v369 = vtanh.pop %v337
    %v370 = vtanh.pop %v338
    %v371 = vtanh.pop %v339
    %v372 = vtanh.pop %v340
    %v373 = vtanh.pop %v341
    %v374 = vtanh.pop %v342
    %v375 = vtanh.pop %v343
    %v376 = vtanh.pop %v344
    %v377 = vtanh.pop %v345
    %v378 = vtanh.pop %v346
    %v379 = vtanh.pop %v347
    %v380 = vtanh.pop %v348
    %v381 = vtanh.pop %v349
    %v382 = vtanh.pop %v350
    %v383 = vtanh.pop %v351
    %v384 = vtanh.pop %v352
    %v385 = vtanh.pop %v353
    %v386 = vtanh.pop %v354
    %v387 = vtanh.pop %v355
    %v388 = vtanh.pop %v356
    %v389 = vtanh.pop %v357
    %v390 = vtanh.pop %v358
    %v391 = vtanh.pop %v359
    %v392 = vtanh.pop %v360
    %v393 = vtanh.pop %v361
    %v394 = vtanh.pop %v362
    %v395 = vtanh.pop %v363
    %v396 = vtanh.pop %v364
    %v397 = vtanh.pop %v365
    %v398 = vtanh.pop %v366
    %v399 = vtanh.pop %v367
    %v400 = vld [vmem:[%s3] sm:$0xff]
    %v401 = vld [vmem:[%s3 + $0x8] sm:$0xff]
    %v402 = vld [vmem:[%s3 + $0x10] sm:$0xff]
    %v403 = vld [vmem:[%s3 + $0x18] sm:$0xff]
    %v404 = vld [vmem:[%s4] sm:$0xff]
    %v405 = vld [vmem:[%s4 + $0x8] sm:$0xff]
    %v406 = vld [vmem:[%s4 + $0x10] sm:$0xff]
    %v407 = vld [vmem:[%s4 + $0x18] sm:$0xff]
    %409 = vset.pattern.permute.xlu0 0
    %410 = vperm.xlu0 %409, %v404
    %v411 = vpop.permute.xlu0 %410
    %414 = vset.pattern.permute.xlu0 0
    %415 = vperm.xlu0 %414, %v405
    %v416 = vpop.permute.xlu0 %415
    %419 = vset.pattern.permute.xlu0 0
    %420 = vperm.xlu0 %419, %v406
    %v421 = vpop.permute.xlu0 %420
    %424 = vset.pattern.permute.xlu0 0
    %425 = vperm.xlu0 %424, %v407
    %v426 = vpop.permute.xlu0 %425
    %vm428 = vcmask 261120
    %v430 = vsel %vm428, %v400, 0
    %v433 = vsel %vm428, %v401, 0
    %v436 = vsel %vm428, %v402, 0
    %v439 = vsel %vm428, %v403, 0
    %441 = vmatprep.subr.mxu0 %v369
    %442 = vmatpush1.msra.mxu0 %v368
    %443 = vmatprep.subr.mxu0 %v377
    %444 = vmatpush1.msra.mxu0 %v376
    %445 = vmatprep.subr.mxu0 %v385
    %446 = vmatpush1.msra.mxu0 %v384
    %447 = vmatprep.subr.mxu0 %v393
    %448 = vmatpush1.msra.mxu0 %v392
    %449 = vmatprep.subr.mxu0 0.0
    %450 = vmatpush1.msra.mxu0 0.0
    %451 = vmatprep.subr.mxu0 0.0
    %452 = vmatpush1.msra.mxu0 0.0
    %453 = vmatprep.subr.mxu0 0.0
    %454 = vmatpush1.msra.mxu0 0.0
    %455 = vmatprep.subr.mxu0 0.0
    %456 = vmatpush1.msra.mxu0 0.0
    %457 = vmatprep.subr.mxu0 0.0
    %458 = vmatpush1.msra.mxu0 0.0
    %459 = vmatprep.subr.mxu0 0.0
    %460 = vmatpush1.msra.mxu0 0.0
    %461 = vmatprep.subr.mxu0 0.0
    %462 = vmatpush1.msra.mxu0 0.0
    %463 = vmatprep.subr.mxu0 0.0
    %464 = vmatpush1.msra.mxu0 0.0
    %465 = vmatprep.subr.mxu0 0.0
    %466 = vmatpush1.msra.mxu0 0.0
    %467 = vmatprep.subr.mxu0 0.0
    %468 = vmatpush1.msra.mxu0 0.0
    %469 = vmatprep.subr.mxu0 0.0
    %470 = vmatpush1.msra.mxu0 0.0
    %471 = vmatprep.subr.mxu0 0.0
    %472 = vmatpush1.msra.mxu0 0.0
    %473 = vmatprep.subr.mxu0 0.0
    %474 = vmatpush1.msra.mxu0 0.0
    %475 = vmatprep.subr.mxu0 0.0
    %476 = vmatpush1.msra.mxu0 0.0
    %477 = vmatprep.subr.mxu0 0.0
    %478 = vmatpush1.msra.mxu0 0.0
    %479 = vmatprep.subr.mxu0 0.0
    %480 = vmatpush1.msra.mxu0 0.0
    %481 = vmatprep.subr.mxu0 0.0
    %482 = vmatpush1.msra.mxu0 0.0
    %483 = vmatprep.subr.mxu0 0.0
    %484 = vmatpush1.msra.mxu0 0.0
    %485 = vmatprep.subr.mxu0 0.0
    %486 = vmatpush1.msra.mxu0 0.0
    %487 = vmatprep.subr.mxu0 0.0
    %488 = vmatpush1.msra.mxu0 0.0
    %489 = vmatprep.subr.mxu0 0.0
    %490 = vmatpush1.msra.mxu0 0.0
    %491 = vmatprep.subr.mxu0 0.0
    %492 = vmatpush1.msra.mxu0 0.0
    %493 = vmatprep.subr.mxu0 0.0
    %494 = vmatpush1.msra.mxu0 0.0
    %495 = vmatprep.subr.mxu0 0.0
    %496 = vmatpush1.msra.mxu0 0.0
    %497 = vmatprep.subr.mxu0 0.0
    %498 = vmatpush1.msra.mxu0 0.0
    %499 = vmatprep.subr.mxu0 0.0
    %500 = vmatpush1.msra.mxu0 0.0
    %501 = vmatprep.subr.mxu0 0.0
    %502 = vmatpush1.msra.mxu0 0.0
    %503 = vmatprep.subr.mxu0 0.0
    %504 = vmatpush1.msra.mxu0 0.0
    %505 = vmatprep.mubr.f32.mxu0 0.0
    %506 = vmatmul.mubr.f32.gmra.mrb[0].mxu0 %v430
    %v507 = vpop.f32.mrb[0].mxu0
    %v508 = vadd.f32 %v411, %v507
    %v509 = vpop.f32.mrb[0].mxu0
    %v510 = vadd.f32 %v411, %v509
    %511 = vmatprep.mubr.f32.mxu0 0.0
    %512 = vmatmul.mubr.f32.gmra.mrb[0].mxu0 %v433
    %v513 = vpop.f32.mrb[0].mxu0
    %v514 = vadd.f32 %v416, %v513
    %v515 = vpop.f32.mrb[0].mxu0
    %v516 = vadd.f32 %v416, %v515
    %517 = vmatprep.mubr.f32.mxu0 0.0
    %518 = vmatmul.mubr.f32.gmra.mrb[0].mxu0 %v436
    %v519 = vpop.f32.mrb[0].mxu0
    %v520 = vadd.f32 %v421, %v519
    %v521 = vpop.f32.mrb[0].mxu0
    %v522 = vadd.f32 %v421, %v521
    %523 = vmatprep.mubr.f32.mxu0 0.0
    %524 = vmatmul.mubr.f32.gmra.mrb[0].mxu0 %v439
    %v525 = vpop.f32.mrb[0].mxu0
    %v526 = vadd.f32 %v426, %v525
    %v527 = vpop.f32.mrb[0].mxu0
    %v528 = vadd.f32 %v426, %v527
    %529 = vdwg.mxu0
    %530 = vmatprep.subr.mxu0 %v371
    %531 = vmatpush1.msra.mxu0 %v370
    %532 = vmatprep.subr.mxu0 %v379
    %533 = vmatpush1.msra.mxu0 %v378
    %534 = vmatprep.subr.mxu0 %v387
    %535 = vmatpush1.msra.mxu0 %v386
    %536 = vmatprep.subr.mxu0 %v395
    %537 = vmatpush1.msra.mxu0 %v394
    %538 = vmatprep.subr.mxu0 0.0
    %539 = vmatpush1.msra.mxu0 0.0
    %540 = vmatprep.subr.mxu0 0.0
    %541 = vmatpush1.msra.mxu0 0.0
    %542 = vmatprep.subr.mxu0 0.0
    %543 = vmatpush1.msra.mxu0 0.0
    %544 = vmatprep.subr.mxu0 0.0
    %545 = vmatpush1.msra.mxu0 0.0
    %546 = vmatprep.subr.mxu0 0.0
    %547 = vmatpush1.msra.mxu0 0.0
    %548 = vmatprep.subr.mxu0 0.0
    %549 = vmatpush1.msra.mxu0 0.0
    %550 = vmatprep.subr.mxu0 0.0
    %551 = vmatpush1.msra.mxu0 0.0
    %552 = vmatprep.subr.mxu0 0.0
    %553 = vmatpush1.msra.mxu0 0.0
    %554 = vmatprep.subr.mxu0 0.0
    %555 = vmatpush1.msra.mxu0 0.0
    %556 = vmatprep.subr.mxu0 0.0
    %557 = vmatpush1.msra.mxu0 0.0
    %558 = vmatprep.subr.mxu0 0.0
    %559 = vmatpush1.msra.mxu0 0.0
    %560 = vmatprep.subr.mxu0 0.0
    %561 = vmatpush1.msra.mxu0 0.0
    %562 = vmatprep.subr.mxu0 0.0
    %563 = vmatpush1.msra.mxu0 0.0
    %564 = vmatprep.subr.mxu0 0.0
    %565 = vmatpush1.msra.mxu0 0.0
    %566 = vmatprep.subr.mxu0 0.0
    %567 = vmatpush1.msra.mxu0 0.0
    %568 = vmatprep.subr.mxu0 0.0
    %569 = vmatpush1.msra.mxu0 0.0
    %570 = vmatprep.subr.mxu0 0.0
    %571 = vmatpush1.msra.mxu0 0.0
    %572 = vmatprep.subr.mxu0 0.0
    %573 = vmatpush1.msra.mxu0 0.0
    %574 = vmatprep.subr.mxu0 0.0
    %575 = vmatpush1.msra.mxu0 0.0
    %576 = vmatprep.subr.mxu0 0.0
    %577 = vmatpush1.msra.mxu0 0.0
    %578 = vmatprep.subr.mxu0 0.0
    %579 = vmatpush1.msra.mxu0 0.0
    %580 = vmatprep.subr.mxu0 0.0
    %581 = vmatpush1.msra.mxu0 0.0
    %582 = vmatprep.subr.mxu0 0.0
    %583 = vmatpush1.msra.mxu0 0.0
    %584 = vmatprep.subr.mxu0 0.0
    %585 = vmatpush1.msra.mxu0 0.0
    %586 = vmatprep.subr.mxu0 0.0
    %587 = vmatpush1.msra.mxu0 0.0
    %588 = vmatprep.subr.mxu0 0.0
    %589 = vmatpush1.msra.mxu0 0.0
    %590 = vmatprep.subr.mxu0 0.0
    %591 = vmatpush1.msra.mxu0 0.0
    %592 = vmatprep.subr.mxu0 0.0
    %593 = vmatpush1.msra.mxu0 0.0
    %594 = vmatprep.mubr.f32.mxu0 0.0
    %595 = vmatmul.mubr.f32.gmra.mrb[0].mxu0 %v430
    %v596 = vpop.f32.mrb[0].mxu0
    %v597 = vadd.f32 %v411, %v596
    %v598 = vpop.f32.mrb[0].mxu0
    %v599 = vadd.f32 %v411, %v598
    %600 = vmatprep.mubr.f32.mxu0 0.0
    %601 = vmatmul.mubr.f32.gmra.mrb[0].mxu0 %v433
    %v602 = vpop.f32.mrb[0].mxu0
    %v603 = vadd.f32 %v416, %v602
    %v604 = vpop.f32.mrb[0].mxu0
    %v605 = vadd.f32 %v416, %v604
    %606 = vmatprep.mubr.f32.mxu0 0.0
    %607 = vmatmul.mubr.f32.gmra.mrb[0].mxu0 %v436
    %v608 = vpop.f32.mrb[0].mxu0
    %v609 = vadd.f32 %v421, %v608
    %v610 = vpop.f32.mrb[0].mxu0
    %v611 = vadd.f32 %v421, %v610
    %612 = vmatprep.mubr.f32.mxu0 0.0
    %613 = vmatmul.mubr.f32.gmra.mrb[0].mxu0 %v439
    %v614 = vpop.f32.mrb[0].mxu0
    %v615 = vadd.f32 %v426, %v614
    %v616 = vpop.f32.mrb[0].mxu0
    %v617 = vadd.f32 %v426, %v616
    %618 = vdwg.mxu0
    %619 = vmatprep.subr.mxu0 %v373
    %620 = vmatpush1.msra.mxu0 %v372
    %621 = vmatprep.subr.mxu0 %v381
    %622 = vmatpush1.msra.mxu0 %v380
    %623 = vmatprep.subr.mxu0 %v389
    %624 = vmatpush1.msra.mxu0 %v388
    %625 = vmatprep.subr.mxu0 %v397
    %626 = vmatpush1.msra.mxu0 %v396
    %627 = vmatprep.subr.mxu0 0.0
    %628 = vmatpush1.msra.mxu0 0.0
    %629 = vmatprep.subr.mxu0 0.0
    %630 = vmatpush1.msra.mxu0 0.0
    %631 = vmatprep.subr.mxu0 0.0
    %632 = vmatpush1.msra.mxu0 0.0
    %633 = vmatprep.subr.mxu0 0.0
    %634 = vmatpush1.msra.mxu0 0.0
    %635 = vmatprep.subr.mxu0 0.0
    %636 = vmatpush1.msra.mxu0 0.0
    %637 = vmatprep.subr.mxu0 0.0
    %638 = vmatpush1.msra.mxu0 0.0
    %639 = vmatprep.subr.mxu0 0.0
    %640 = vmatpush1.msra.mxu0 0.0
    %641 = vmatprep.subr.mxu0 0.0
    %642 = vmatpush1.msra.mxu0 0.0
    %643 = vmatprep.subr.mxu0 0.0
    %644 = vmatpush1.msra.mxu0 0.0
    %645 = vmatprep.subr.mxu0 0.0
    %646 = vmatpush1.msra.mxu0 0.0
    %647 = vmatprep.subr.mxu0 0.0
    %648 = vmatpush1.msra.mxu0 0.0
    %649 = vmatprep.subr.mxu0 0.0
    %650 = vmatpush1.msra.mxu0 0.0
    %651 = vmatprep.subr.mxu0 0.0
    %652 = vmatpush1.msra.mxu0 0.0
    %653 = vmatprep.subr.mxu0 0.0
    %654 = vmatpush1.msra.mxu0 0.0
    %655 = vmatprep.subr.mxu0 0.0
    %656 = vmatpush1.msra.mxu0 0.0
    %657 = vmatprep.subr.mxu0 0.0
    %658 = vmatpush1.msra.mxu0 0.0
    %659 = vmatprep.subr.mxu0 0.0
    %660 = vmatpush1.msra.mxu0 0.0
    %661 = vmatprep.subr.mxu0 0.0
    %662 = vmatpush1.msra.mxu0 0.0
    %663 = vmatprep.subr.mxu0 0.0
    %664 = vmatpush1.msra.mxu0 0.0
    %665 = vmatprep.subr.mxu0 0.0
    %666 = vmatpush1.msra.mxu0 0.0
    %667 = vmatprep.subr.mxu0 0.0
    %668 = vmatpush1.msra.mxu0 0.0
    %669 = vmatprep.subr.mxu0 0.0
    %670 = vmatpush1.msra.mxu0 0.0
    %671 = vmatprep.subr.mxu0 0.0
    %672 = vmatpush1.msra.mxu0 0.0
    %673 = vmatprep.subr.mxu0 0.0
    %674 = vmatpush1.msra.mxu0 0.0
    %675 = vmatprep.subr.mxu0 0.0
    %676 = vmatpush1.msra.mxu0 0.0
    %677 = vmatprep.subr.mxu0 0.0
    %678 = vmatpush1.msra.mxu0 0.0
    %679 = vmatprep.subr.mxu0 0.0
    %680 = vmatpush1.msra.mxu0 0.0
    %681 = vmatprep.subr.mxu0 0.0
    %682 = vmatpush1.msra.mxu0 0.0
    %683 = vmatprep.mubr.f32.mxu0 0.0
    %684 = vmatmul.mubr.f32.gmra.mrb[0].mxu0 %v430
    %v685 = vpop.f32.mrb[0].mxu0
    %v686 = vadd.f32 %v411, %v685
    %v687 = vpop.f32.mrb[0].mxu0
    %v688 = vadd.f32 %v411, %v687
    %689 = vmatprep.mubr.f32.mxu0 0.0
    %690 = vmatmul.mubr.f32.gmra.mrb[0].mxu0 %v433
    %v691 = vpop.f32.mrb[0].mxu0
    %v692 = vadd.f32 %v416, %v691
    %v693 = vpop.f32.mrb[0].mxu0
    %v694 = vadd.f32 %v416, %v693
    %695 = vmatprep.mubr.f32.mxu0 0.0
    %696 = vmatmul.mubr.f32.gmra.mrb[0].mxu0 %v436
    %v697 = vpop.f32.mrb[0].mxu0
    %v698 = vadd.f32 %v421, %v697
    %v699 = vpop.f32.mrb[0].mxu0
    %v700 = vadd.f32 %v421, %v699
    %701 = vmatprep.mubr.f32.mxu0 0.0
    %702 = vmatmul.mubr.f32.gmra.mrb[0].mxu0 %v439
    %v703 = vpop.f32.mrb[0].mxu0
    %v704 = vadd.f32 %v426, %v703
    %v705 = vpop.f32.mrb[0].mxu0
    %v706 = vadd.f32 %v426, %v705
    %707 = vdwg.mxu0
    %708 = vmatprep.subr.mxu0 %v375
    %709 = vmatpush1.msra.mxu0 %v374
    %710 = vmatprep.subr.mxu0 %v383
    %711 = vmatpush1.msra.mxu0 %v382
    %712 = vmatprep.subr.mxu0 %v391
    %713 = vmatpush1.msra.mxu0 %v390
    %714 = vmatprep.subr.mxu0 %v399
    %715 = vmatpush1.msra.mxu0 %v398
    %716 = vmatprep.subr.mxu0 0.0
    %717 = vmatpush1.msra.mxu0 0.0
    %718 = vmatprep.subr.mxu0 0.0
    %719 = vmatpush1.msra.mxu0 0.0
    %720 = vmatprep.subr.mxu0 0.0
    %721 = vmatpush1.msra.mxu0 0.0
    %722 = vmatprep.subr.mxu0 0.0
    %723 = vmatpush1.msra.mxu0 0.0
    %724 = vmatprep.subr.mxu0 0.0
    %725 = vmatpush1.msra.mxu0 0.0
    %726 = vmatprep.subr.mxu0 0.0
    %727 = vmatpush1.msra.mxu0 0.0
    %728 = vmatprep.subr.mxu0 0.0
    %729 = vmatpush1.msra.mxu0 0.0
    %730 = vmatprep.subr.mxu0 0.0
    %731 = vmatpush1.msra.mxu0 0.0
    %732 = vmatprep.subr.mxu0 0.0
    %733 = vmatpush1.msra.mxu0 0.0
    %734 = vmatprep.subr.mxu0 0.0
    %735 = vmatpush1.msra.mxu0 0.0
    %736 = vmatprep.subr.mxu0 0.0
    %737 = vmatpush1.msra.mxu0 0.0
    %738 = vmatprep.subr.mxu0 0.0
    %739 = vmatpush1.msra.mxu0 0.0
    %740 = vmatprep.subr.mxu0 0.0
    %741 = vmatpush1.msra.mxu0 0.0
    %742 = vmatprep.subr.mxu0 0.0
    %743 = vmatpush1.msra.mxu0 0.0
    %744 = vmatprep.subr.mxu0 0.0
    %745 = vmatpush1.msra.mxu0 0.0
    %746 = vmatprep.subr.mxu0 0.0
    %747 = vmatpush1.msra.mxu0 0.0
    %748 = vmatprep.subr.mxu0 0.0
    %749 = vmatpush1.msra.mxu0 0.0
    %750 = vmatprep.subr.mxu0 0.0
    %751 = vmatpush1.msra.mxu0 0.0
    %752 = vmatprep.subr.mxu0 0.0
    %753 = vmatpush1.msra.mxu0 0.0
    %754 = vmatprep.subr.mxu0 0.0
    %755 = vmatpush1.msra.mxu0 0.0
    %756 = vmatprep.subr.mxu0 0.0
    %757 = vmatpush1.msra.mxu0 0.0
    %758 = vmatprep.subr.mxu0 0.0
    %759 = vmatpush1.msra.mxu0 0.0
    %760 = vmatprep.subr.mxu0 0.0
    %761 = vmatpush1.msra.mxu0 0.0
    %762 = vmatprep.subr.mxu0 0.0
    %763 = vmatpush1.msra.mxu0 0.0
    %764 = vmatprep.subr.mxu0 0.0
    %765 = vmatpush1.msra.mxu0 0.0
    %766 = vmatprep.subr.mxu0 0.0
    %767 = vmatpush1.msra.mxu0 0.0
    %768 = vmatprep.subr.mxu0 0.0
    %769 = vmatpush1.msra.mxu0 0.0
    %770 = vmatprep.subr.mxu0 0.0
    %771 = vmatpush1.msra.mxu0 0.0
    %772 = vmatprep.mubr.f32.mxu0 0.0
    %773 = vmatmul.mubr.f32.gmra.mrb[0].mxu0 %v430
    %v774 = vpop.f32.mrb[0].mxu0
    %v775 = vadd.f32 %v411, %v774
    %v776 = vpop.f32.mrb[0].mxu0
    %v777 = vadd.f32 %v411, %v776
    %778 = vmatprep.mubr.f32.mxu0 0.0
    %779 = vmatmul.mubr.f32.gmra.mrb[0].mxu0 %v433
    %v780 = vpop.f32.mrb[0].mxu0
    %v781 = vadd.f32 %v416, %v780
    %v782 = vpop.f32.mrb[0].mxu0
    %v783 = vadd.f32 %v416, %v782
    %784 = vmatprep.mubr.f32.mxu0 0.0
    %785 = vmatmul.mubr.f32.gmra.mrb[0].mxu0 %v436
    %v786 = vpop.f32.mrb[0].mxu0
    %v787 = vadd.f32 %v421, %v786
    %v788 = vpop.f32.mrb[0].mxu0
    %v789 = vadd.f32 %v421, %v788
    %790 = vmatprep.mubr.f32.mxu0 0.0
    %791 = vmatmul.mubr.f32.gmra.mrb[0].mxu0 %v439
    %v792 = vpop.f32.mrb[0].mxu0
    %v793 = vadd.f32 %v426, %v792
    %v794 = vpop.f32.mrb[0].mxu0
    %v795 = vadd.f32 %v426, %v794
    %796 = vdwg.mxu0
    %v797 = vtanh.pop %v508
    %v798 = vtanh.pop %v510
    %v799 = vtanh.pop %v597
    %v800 = vtanh.pop %v599
    %v801 = vtanh.pop %v686
    %v802 = vtanh.pop %v688
    %v803 = vtanh.pop %v775
    %v804 = vtanh.pop %v777
    %v805 = vtanh.pop %v514
    %v806 = vtanh.pop %v516
    %v807 = vtanh.pop %v603
    %v808 = vtanh.pop %v605
    %v809 = vtanh.pop %v692
    %v810 = vtanh.pop %v694
    %v811 = vtanh.pop %v781
    %v812 = vtanh.pop %v783
    %v813 = vtanh.pop %v520
    %v814 = vtanh.pop %v522
    %v815 = vtanh.pop %v609
    %v816 = vtanh.pop %v611
    %v817 = vtanh.pop %v698
    %v818 = vtanh.pop %v700
    %v819 = vtanh.pop %v787
    %v820 = vtanh.pop %v789
    %v821 = vtanh.pop %v526
    %v822 = vtanh.pop %v528
    %v823 = vtanh.pop %v615
    %v824 = vtanh.pop %v617
    %v825 = vtanh.pop %v704
    %v826 = vtanh.pop %v706
    %v827 = vtanh.pop %v793
    %v828 = vtanh.pop %v795
    %s829 = scalar_lea.vmem %s3, 32
    %v830 = vld [vmem:[%s829] sm:$0xff]
    %v831 = vld [vmem:[%s829 + $0x8] sm:$0xff]
    %v832 = vld [vmem:[%s829 + $0x10] sm:$0xff]
    %v833 = vld [vmem:[%s829 + $0x18] sm:$0xff]
    %s834 = scalar_lea.vmem %s4, 32
    %v835 = vld [vmem:[%s834] sm:$0xff]
    %v836 = vld [vmem:[%s834 + $0x8] sm:$0xff]
    %v837 = vld [vmem:[%s834 + $0x10] sm:$0xff]
    %v838 = vld [vmem:[%s834 + $0x18] sm:$0xff]
    %840 = vset.pattern.permute.xlu0 0
    %841 = vperm.xlu0 %840, %v835
    %v842 = vpop.permute.xlu0 %841
    %845 = vset.pattern.permute.xlu0 0
    %846 = vperm.xlu0 %845, %v836
    %v847 = vpop.permute.xlu0 %846
    %850 = vset.pattern.permute.xlu0 0
    %851 = vperm.xlu0 %850, %v837
    %v852 = vpop.permute.xlu0 %851
    %855 = vset.pattern.permute.xlu0 0
    %856 = vperm.xlu0 %855, %v838
    %v857 = vpop.permute.xlu0 %856
    %v860 = vsel %vm428, %v830, 0
    %v863 = vsel %vm428, %v831, 0
    %v866 = vsel %vm428, %v832, 0
    %v869 = vsel %vm428, %v833, 0
    %871 = vmatprep.subr.mxu0 %v798
    %872 = vmatpush1.msra.mxu0 %v797
    %873 = vmatprep.subr.mxu0 %v806
    %874 = vmatpush1.msra.mxu0 %v805
    %875 = vmatprep.subr.mxu0 %v814
    %876 = vmatpush1.msra.mxu0 %v813
    %877 = vmatprep.subr.mxu0 %v822
    %878 = vmatpush1.msra.mxu0 %v821
    %879 = vmatprep.subr.mxu0 0.0
    %880 = vmatpush1.msra.mxu0 0.0
    %881 = vmatprep.subr.mxu0 0.0
    %882 = vmatpush1.msra.mxu0 0.0
    %883 = vmatprep.subr.mxu0 0.0
    %884 = vmatpush1.msra.mxu0 0.0
    %885 = vmatprep.subr.mxu0 0.0
    %886 = vmatpush1.msra.mxu0 0.0
    %887 = vmatprep.subr.mxu0 0.0
    %888 = vmatpush1.msra.mxu0 0.0
    %889 = vmatprep.subr.mxu0 0.0
    %890 = vmatpush1.msra.mxu0 0.0
    %891 = vmatprep.subr.mxu0 0.0
    %892 = vmatpush1.msra.mxu0 0.0
    %893 = vmatprep.subr.mxu0 0.0
    %894 = vmatpush1.msra.mxu0 0.0
    %895 = vmatprep.subr.mxu0 0.0
    %896 = vmatpush1.msra.mxu0 0.0
    %897 = vmatprep.subr.mxu0 0.0
    %898 = vmatpush1.msra.mxu0 0.0
    %899 = vmatprep.subr.mxu0 0.0
    %900 = vmatpush1.msra.mxu0 0.0
    %901 = vmatprep.subr.mxu0 0.0
    %902 = vmatpush1.msra.mxu0 0.0
    %903 = vmatprep.subr.mxu0 0.0
    %904 = vmatpush1.msra.mxu0 0.0
    %905 = vmatprep.subr.mxu0 0.0
    %906 = vmatpush1.msra.mxu0 0.0
    %907 = vmatprep.subr.mxu0 0.0
    %908 = vmatpush1.msra.mxu0 0.0
    %909 = vmatprep.subr.mxu0 0.0
    %910 = vmatpush1.msra.mxu0 0.0
    %911 = vmatprep.subr.mxu0 0.0
    %912 = vmatpush1.msra.mxu0 0.0
    %913 = vmatprep.subr.mxu0 0.0
    %914 = vmatpush1.msra.mxu0 0.0
    %915 = vmatprep.subr.mxu0 0.0
    %916 = vmatpush1.msra.mxu0 0.0
    %917 = vmatprep.subr.mxu0 0.0
    %918 = vmatpush1.msra.mxu0 0.0
    %919 = vmatprep.subr.mxu0 0.0
    %920 = vmatpush1.msra.mxu0 0.0
    %921 = vmatprep.subr.mxu0 0.0
    %922 = vmatpush1.msra.mxu0 0.0
    %923 = vmatprep.subr.mxu0 0.0
    %924 = vmatpush1.msra.mxu0 0.0
    %925 = vmatprep.subr.mxu0 0.0
    %926 = vmatpush1.msra.mxu0 0.0
    %927 = vmatprep.subr.mxu0 0.0
    %928 = vmatpush1.msra.mxu0 0.0
    %929 = vmatprep.subr.mxu0 0.0
    %930 = vmatpush1.msra.mxu0 0.0
    %931 = vmatprep.subr.mxu0 0.0
    %932 = vmatpush1.msra.mxu0 0.0
    %933 = vmatprep.subr.mxu0 0.0
    %934 = vmatpush1.msra.mxu0 0.0
    %935 = vmatprep.mubr.f32.mxu0 0.0
    %936 = vmatmul.mubr.f32.gmra.mrb[0].mxu0 %v860
    %v937 = vpop.f32.mrb[0].mxu0
    %v938 = vadd.f32 %v842, %v937
    %v939 = vpop.f32.mrb[0].mxu0
    %v940 = vadd.f32 %v842, %v939
    %941 = vmatprep.mubr.f32.mxu0 0.0
    %942 = vmatmul.mubr.f32.gmra.mrb[0].mxu0 %v863
    %v943 = vpop.f32.mrb[0].mxu0
    %v944 = vadd.f32 %v847, %v943
    %v945 = vpop.f32.mrb[0].mxu0
    %v946 = vadd.f32 %v847, %v945
    %947 = vmatprep.mubr.f32.mxu0 0.0
    %948 = vmatmul.mubr.f32.gmra.mrb[0].mxu0 %v866
    %v949 = vpop.f32.mrb[0].mxu0
    %v950 = vadd.f32 %v852, %v949
    %v951 = vpop.f32.mrb[0].mxu0
    %v952 = vadd.f32 %v852, %v951
    %953 = vmatprep.mubr.f32.mxu0 0.0
    %954 = vmatmul.mubr.f32.gmra.mrb[0].mxu0 %v869
    %v955 = vpop.f32.mrb[0].mxu0
    %v956 = vadd.f32 %v857, %v955
    %v957 = vpop.f32.mrb[0].mxu0
    %v958 = vadd.f32 %v857, %v957
    %959 = vdwg.mxu0
    %960 = vmatprep.subr.mxu0 %v800
    %961 = vmatpush1.msra.mxu0 %v799
    %962 = vmatprep.subr.mxu0 %v808
    %963 = vmatpush1.msra.mxu0 %v807
    %964 = vmatprep.subr.mxu0 %v816
    %965 = vmatpush1.msra.mxu0 %v815
    %966 = vmatprep.subr.mxu0 %v824
    %967 = vmatpush1.msra.mxu0 %v823
    %968 = vmatprep.subr.mxu0 0.0
    %969 = vmatpush1.msra.mxu0 0.0
    %970 = vmatprep.subr.mxu0 0.0
    %971 = vmatpush1.msra.mxu0 0.0
    %972 = vmatprep.subr.mxu0 0.0
    %973 = vmatpush1.msra.mxu0 0.0
    %974 = vmatprep.subr.mxu0 0.0
    %975 = vmatpush1.msra.mxu0 0.0
    %976 = vmatprep.subr.mxu0 0.0
    %977 = vmatpush1.msra.mxu0 0.0
    %978 = vmatprep.subr.mxu0 0.0
    %979 = vmatpush1.msra.mxu0 0.0
    %980 = vmatprep.subr.mxu0 0.0
    %981 = vmatpush1.msra.mxu0 0.0
    %982 = vmatprep.subr.mxu0 0.0
    %983 = vmatpush1.msra.mxu0 0.0
    %984 = vmatprep.subr.mxu0 0.0
    %985 = vmatpush1.msra.mxu0 0.0
    %986 = vmatprep.subr.mxu0 0.0
    %987 = vmatpush1.msra.mxu0 0.0
    %988 = vmatprep.subr.mxu0 0.0
    %989 = vmatpush1.msra.mxu0 0.0
    %990 = vmatprep.subr.mxu0 0.0
    %991 = vmatpush1.msra.mxu0 0.0
    %992 = vmatprep.subr.mxu0 0.0
    %993 = vmatpush1.msra.mxu0 0.0
    %994 = vmatprep.subr.mxu0 0.0
    %995 = vmatpush1.msra.mxu0 0.0
    %996 = vmatprep.subr.mxu0 0.0
    %997 = vmatpush1.msra.mxu0 0.0
    %998 = vmatprep.subr.mxu0 0.0
    %999 = vmatpush1.msra.mxu0 0.0
    %1000 = vmatprep.subr.mxu0 0.0
    %1001 = vmatpush1.msra.mxu0 0.0
    %1002 = vmatprep.subr.mxu0 0.0
    %1003 = vmatpush1.msra.mxu0 0.0
    %1004 = vmatprep.subr.mxu0 0.0
    %1005 = vmatpush1.msra.mxu0 0.0
    %1006 = vmatprep.subr.mxu0 0.0
    %1007 = vmatpush1.msra.mxu0 0.0
    %1008 = vmatprep.subr.mxu0 0.0
    %1009 = vmatpush1.msra.mxu0 0.0
    %1010 = vmatprep.subr.mxu0 0.0
    %1011 = vmatpush1.msra.mxu0 0.0
    %1012 = vmatprep.subr.mxu0 0.0
    %1013 = vmatpush1.msra.mxu0 0.0
    %1014 = vmatprep.subr.mxu0 0.0
    %1015 = vmatpush1.msra.mxu0 0.0
    %1016 = vmatprep.subr.mxu0 0.0
    %1017 = vmatpush1.msra.mxu0 0.0
    %1018 = vmatprep.subr.mxu0 0.0
    %1019 = vmatpush1.msra.mxu0 0.0
    %1020 = vmatprep.subr.mxu0 0.0
    %1021 = vmatpush1.msra.mxu0 0.0
    %1022 = vmatprep.subr.mxu0 0.0
    %1023 = vmatpush1.msra.mxu0 0.0
    %1024 = vmatprep.mubr.f32.mxu0 0.0
    %1025 = vmatmul.mubr.f32.gmra.mrb[0].mxu0 %v860
    %v1026 = vpop.f32.mrb[0].mxu0
    %v1027 = vadd.f32 %v842, %v1026
    %v1028 = vpop.f32.mrb[0].mxu0
    %v1029 = vadd.f32 %v842, %v1028
    %1030 = vmatprep.mubr.f32.mxu0 0.0
    %1031 = vmatmul.mubr.f32.gmra.mrb[0].mxu0 %v863
    %v1032 = vpop.f32.mrb[0].mxu0
    %v1033 = vadd.f32 %v847, %v1032
    %v1034 = vpop.f32.mrb[0].mxu0
    %v1035 = vadd.f32 %v847, %v1034
    %1036 = vmatprep.mubr.f32.mxu0 0.0
    %1037 = vmatmul.mubr.f32.gmra.mrb[0].mxu0 %v866
    %v1038 = vpop.f32.mrb[0].mxu0
    %v1039 = vadd.f32 %v852, %v1038
    %v1040 = vpop.f32.mrb[0].mxu0
    %v1041 = vadd.f32 %v852, %v1040
    %1042 = vmatprep.mubr.f32.mxu0 0.0
    %1043 = vmatmul.mubr.f32.gmra.mrb[0].mxu0 %v869
    %v1044 = vpop.f32.mrb[0].mxu0
    %v1045 = vadd.f32 %v857, %v1044
    %v1046 = vpop.f32.mrb[0].mxu0
    %v1047 = vadd.f32 %v857, %v1046
    %1048 = vdwg.mxu0
    %1049 = vmatprep.subr.mxu0 %v802
    %1050 = vmatpush1.msra.mxu0 %v801
    %1051 = vmatprep.subr.mxu0 %v810
    %1052 = vmatpush1.msra.mxu0 %v809
    %1053 = vmatprep.subr.mxu0 %v818
    %1054 = vmatpush1.msra.mxu0 %v817
    %1055 = vmatprep.subr.mxu0 %v826
    %1056 = vmatpush1.msra.mxu0 %v825
    %1057 = vmatprep.subr.mxu0 0.0
    %1058 = vmatpush1.msra.mxu0 0.0
    %1059 = vmatprep.subr.mxu0 0.0
    %1060 = vmatpush1.msra.mxu0 0.0
    %1061 = vmatprep.subr.mxu0 0.0
    %1062 = vmatpush1.msra.mxu0 0.0
    %1063 = vmatprep.subr.mxu0 0.0
    %1064 = vmatpush1.msra.mxu0 0.0
    %1065 = vmatprep.subr.mxu0 0.0
    %1066 = vmatpush1.msra.mxu0 0.0
    %1067 = vmatprep.subr.mxu0 0.0
    %1068 = vmatpush1.msra.mxu0 0.0
    %1069 = vmatprep.subr.mxu0 0.0
    %1070 = vmatpush1.msra.mxu0 0.0
    %1071 = vmatprep.subr.mxu0 0.0
    %1072 = vmatpush1.msra.mxu0 0.0
    %1073 = vmatprep.subr.mxu0 0.0
    %1074 = vmatpush1.msra.mxu0 0.0
    %1075 = vmatprep.subr.mxu0 0.0
    %1076 = vmatpush1.msra.mxu0 0.0
    %1077 = vmatprep.subr.mxu0 0.0
    %1078 = vmatpush1.msra.mxu0 0.0
    %1079 = vmatprep.subr.mxu0 0.0
    %1080 = vmatpush1.msra.mxu0 0.0
    %1081 = vmatprep.subr.mxu0 0.0
    %1082 = vmatpush1.msra.mxu0 0.0
    %1083 = vmatprep.subr.mxu0 0.0
    %1084 = vmatpush1.msra.mxu0 0.0
    %1085 = vmatprep.subr.mxu0 0.0
    %1086 = vmatpush1.msra.mxu0 0.0
    %1087 = vmatprep.subr.mxu0 0.0
    %1088 = vmatpush1.msra.mxu0 0.0
    %1089 = vmatprep.subr.mxu0 0.0
    %1090 = vmatpush1.msra.mxu0 0.0
    %1091 = vmatprep.subr.mxu0 0.0
    %1092 = vmatpush1.msra.mxu0 0.0
    %1093 = vmatprep.subr.mxu0 0.0
    %1094 = vmatpush1.msra.mxu0 0.0
    %1095 = vmatprep.subr.mxu0 0.0
    %1096 = vmatpush1.msra.mxu0 0.0
    %1097 = vmatprep.subr.mxu0 0.0
    %1098 = vmatpush1.msra.mxu0 0.0
    %1099 = vmatprep.subr.mxu0 0.0
    %1100 = vmatpush1.msra.mxu0 0.0
    %1101 = vmatprep.subr.mxu0 0.0
    %1102 = vmatpush1.msra.mxu0 0.0
    %1103 = vmatprep.subr.mxu0 0.0
    %1104 = vmatpush1.msra.mxu0 0.0
    %1105 = vmatprep.subr.mxu0 0.0
    %1106 = vmatpush1.msra.mxu0 0.0
    %1107 = vmatprep.subr.mxu0 0.0
    %1108 = vmatpush1.msra.mxu0 0.0
    %1109 = vmatprep.subr.mxu0 0.0
    %1110 = vmatpush1.msra.mxu0 0.0
    %1111 = vmatprep.subr.mxu0 0.0
    %1112 = vmatpush1.msra.mxu0 0.0
    %1113 = vmatprep.mubr.f32.mxu0 0.0
    %1114 = vmatmul.mubr.f32.gmra.mrb[0].mxu0 %v860
    %v1115 = vpop.f32.mrb[0].mxu0
    %v1116 = vadd.f32 %v842, %v1115
    %v1117 = vpop.f32.mrb[0].mxu0
    %v1118 = vadd.f32 %v842, %v1117
    %1119 = vmatprep.mubr.f32.mxu0 0.0
    %1120 = vmatmul.mubr.f32.gmra.mrb[0].mxu0 %v863
    %v1121 = vpop.f32.mrb[0].mxu0
    %v1122 = vadd.f32 %v847, %v1121
    %v1123 = vpop.f32.mrb[0].mxu0
    %v1124 = vadd.f32 %v847, %v1123
    %1125 = vmatprep.mubr.f32.mxu0 0.0
    %1126 = vmatmul.mubr.f32.gmra.mrb[0].mxu0 %v866
    %v1127 = vpop.f32.mrb[0].mxu0
    %v1128 = vadd.f32 %v852, %v1127
    %v1129 = vpop.f32.mrb[0].mxu0
    %v1130 = vadd.f32 %v852, %v1129
    %1131 = vmatprep.mubr.f32.mxu0 0.0
    %1132 = vmatmul.mubr.f32.gmra.mrb[0].mxu0 %v869
    %v1133 = vpop.f32.mrb[0].mxu0
    %v1134 = vadd.f32 %v857, %v1133
    %v1135 = vpop.f32.mrb[0].mxu0
    %v1136 = vadd.f32 %v857, %v1135
    %1137 = vdwg.mxu0
    %1138 = vmatprep.subr.mxu0 %v804
    %1139 = vmatpush1.msra.mxu0 %v803
    %1140 = vmatprep.subr.mxu0 %v812
    %1141 = vmatpush1.msra.mxu0 %v811
    %1142 = vmatprep.subr.mxu0 %v820
    %1143 = vmatpush1.msra.mxu0 %v819
    %1144 = vmatprep.subr.mxu0 %v828
    %1145 = vmatpush1.msra.mxu0 %v827
    %1146 = vmatprep.subr.mxu0 0.0
    %1147 = vmatpush1.msra.mxu0 0.0
    %1148 = vmatprep.subr.mxu0 0.0
    %1149 = vmatpush1.msra.mxu0 0.0
    %1150 = vmatprep.subr.mxu0 0.0
    %1151 = vmatpush1.msra.mxu0 0.0
    %1152 = vmatprep.subr.mxu0 0.0
    %1153 = vmatpush1.msra.mxu0 0.0
    %1154 = vmatprep.subr.mxu0 0.0
    %1155 = vmatpush1.msra.mxu0 0.0
    %1156 = vmatprep.subr.mxu0 0.0
    %1157 = vmatpush1.msra.mxu0 0.0
    %1158 = vmatprep.subr.mxu0 0.0
    %1159 = vmatpush1.msra.mxu0 0.0
    %1160 = vmatprep.subr.mxu0 0.0
    %1161 = vmatpush1.msra.mxu0 0.0
    %1162 = vmatprep.subr.mxu0 0.0
    %1163 = vmatpush1.msra.mxu0 0.0
    %1164 = vmatprep.subr.mxu0 0.0
    %1165 = vmatpush1.msra.mxu0 0.0
    %1166 = vmatprep.subr.mxu0 0.0
    %1167 = vmatpush1.msra.mxu0 0.0
    %1168 = vmatprep.subr.mxu0 0.0
    %1169 = vmatpush1.msra.mxu0 0.0
    %1170 = vmatprep.subr.mxu0 0.0
    %1171 = vmatpush1.msra.mxu0 0.0
    %1172 = vmatprep.subr.mxu0 0.0
    %1173 = vmatpush1.msra.mxu0 0.0
    %1174 = vmatprep.subr.mxu0 0.0
    %1175 = vmatpush1.msra.mxu0 0.0
    %1176 = vmatprep.subr.mxu0 0.0
    %1177 = vmatpush1.msra.mxu0 0.0
    %1178 = vmatprep.subr.mxu0 0.0
    %1179 = vmatpush1.msra.mxu0 0.0
    %1180 = vmatprep.subr.mxu0 0.0
    %1181 = vmatpush1.msra.mxu0 0.0
    %1182 = vmatprep.subr.mxu0 0.0
    %1183 = vmatpush1.msra.mxu0 0.0
    %1184 = vmatprep.subr.mxu0 0.0
    %1185 = vmatpush1.msra.mxu0 0.0
    %1186 = vmatprep.subr.mxu0 0.0
    %1187 = vmatpush1.msra.mxu0 0.0
    %1188 = vmatprep.subr.mxu0 0.0
    %1189 = vmatpush1.msra.mxu0 0.0
    %1190 = vmatprep.subr.mxu0 0.0
    %1191 = vmatpush1.msra.mxu0 0.0
    %1192 = vmatprep.subr.mxu0 0.0
    %1193 = vmatpush1.msra.mxu0 0.0
    %1194 = vmatprep.subr.mxu0 0.0
    %1195 = vmatpush1.msra.mxu0 0.0
    %1196 = vmatprep.subr.mxu0 0.0
    %1197 = vmatpush1.msra.mxu0 0.0
    %1198 = vmatprep.subr.mxu0 0.0
    %1199 = vmatpush1.msra.mxu0 0.0
    %1200 = vmatprep.subr.mxu0 0.0
    %1201 = vmatpush1.msra.mxu0 0.0
    %1202 = vmatprep.mubr.f32.mxu0 0.0
    %1203 = vmatmul.mubr.f32.gmra.mrb[0].mxu0 %v860
    %v1204 = vpop.f32.mrb[0].mxu0
    %v1205 = vadd.f32 %v842, %v1204
    %v1206 = vpop.f32.mrb[0].mxu0
    %v1207 = vadd.f32 %v842, %v1206
    %1208 = vmatprep.mubr.f32.mxu0 0.0
    %1209 = vmatmul.mubr.f32.gmra.mrb[0].mxu0 %v863
    %v1210 = vpop.f32.mrb[0].mxu0
    %v1211 = vadd.f32 %v847, %v1210
    %v1212 = vpop.f32.mrb[0].mxu0
    %v1213 = vadd.f32 %v847, %v1212
    %1214 = vmatprep.mubr.f32.mxu0 0.0
    %1215 = vmatmul.mubr.f32.gmra.mrb[0].mxu0 %v866
    %v1216 = vpop.f32.mrb[0].mxu0
    %v1217 = vadd.f32 %v852, %v1216
    %v1218 = vpop.f32.mrb[0].mxu0
    %v1219 = vadd.f32 %v852, %v1218
    %1220 = vmatprep.mubr.f32.mxu0 0.0
    %1221 = vmatmul.mubr.f32.gmra.mrb[0].mxu0 %v869
    %v1222 = vpop.f32.mrb[0].mxu0
    %v1223 = vadd.f32 %v857, %v1222
    %v1224 = vpop.f32.mrb[0].mxu0
    %v1225 = vadd.f32 %v857, %v1224
    %1226 = vdwg.mxu0
    %v1227 = vtanh.pop %v938
    %v1228 = vtanh.pop %v940
    %v1229 = vtanh.pop %v1027
    %v1230 = vtanh.pop %v1029
    %v1231 = vtanh.pop %v1116
    %v1232 = vtanh.pop %v1118
    %v1233 = vtanh.pop %v1205
    %v1234 = vtanh.pop %v1207
    %v1235 = vtanh.pop %v944
    %v1236 = vtanh.pop %v946
    %v1237 = vtanh.pop %v1033
    %v1238 = vtanh.pop %v1035
    %v1239 = vtanh.pop %v1122
    %v1240 = vtanh.pop %v1124
    %v1241 = vtanh.pop %v1211
    %v1242 = vtanh.pop %v1213
    %v1243 = vtanh.pop %v950
    %v1244 = vtanh.pop %v952
    %v1245 = vtanh.pop %v1039
    %v1246 = vtanh.pop %v1041
    %v1247 = vtanh.pop %v1128
    %v1248 = vtanh.pop %v1130
    %v1249 = vtanh.pop %v1217
    %v1250 = vtanh.pop %v1219
    %v1251 = vtanh.pop %v956
    %v1252 = vtanh.pop %v958
    %v1253 = vtanh.pop %v1045
    %v1254 = vtanh.pop %v1047
    %v1255 = vtanh.pop %v1134
    %v1256 = vtanh.pop %v1136
    %v1257 = vtanh.pop %v1223
    %v1258 = vtanh.pop %v1225
    %v1259 = vld [vmem:[%s5] sm:$0xff]
    %v1260 = vld [vmem:[%s5 + $0x8] sm:$0xff]
    %v1261 = vld [vmem:[%s5 + $0x10] sm:$0xff]
    %v1262 = vld [vmem:[%s5 + $0x18] sm:$0xff]
    %1264 = vset.pattern.permute.xlu0 0
    %1265 = vperm.xlu0 %1264, %v1259
    %v1266 = vpop.permute.xlu0 %1265
    %1269 = vset.pattern.permute.xlu0 0
    %1270 = vperm.xlu0 %1269, %v1260
    %v1271 = vpop.permute.xlu0 %1270
    %1274 = vset.pattern.permute.xlu0 0
    %1275 = vperm.xlu0 %1274, %v1261
    %v1276 = vpop.permute.xlu0 %1275
    %1279 = vset.pattern.permute.xlu0 0
    %1280 = vperm.xlu0 %1279, %v1262
    %v1281 = vpop.permute.xlu0 %1280
    %v1283 = vmul.f32 %v1227, %v1266
    %v1284 = vmul.f32 %v1228, %v1266
    %v1285 = vmul.f32 %v1229, %v1266
    %v1286 = vmul.f32 %v1230, %v1266
    %v1287 = vmul.f32 %v1231, %v1266
    %v1288 = vmul.f32 %v1232, %v1266
    %v1289 = vmul.f32 %v1233, %v1266
    %v1290 = vmul.f32 %v1234, %v1266
    %v1291 = vmul.f32 %v1235, %v1271
    %v1292 = vmul.f32 %v1236, %v1271
    %v1293 = vmul.f32 %v1237, %v1271
    %v1294 = vmul.f32 %v1238, %v1271
    %v1295 = vmul.f32 %v1239, %v1271
    %v1296 = vmul.f32 %v1240, %v1271
    %v1297 = vmul.f32 %v1241, %v1271
    %v1298 = vmul.f32 %v1242, %v1271
    %v1299 = vmul.f32 %v1243, %v1276
    %v1300 = vmul.f32 %v1244, %v1276
    %v1301 = vmul.f32 %v1245, %v1276
    %v1302 = vmul.f32 %v1246, %v1276
    %v1303 = vmul.f32 %v1247, %v1276
    %v1304 = vmul.f32 %v1248, %v1276
    %v1305 = vmul.f32 %v1249, %v1276
    %v1306 = vmul.f32 %v1250, %v1276
    %v1307 = vmul.f32 %v1251, %v1281
    %v1308 = vmul.f32 %v1252, %v1281
    %v1309 = vmul.f32 %v1253, %v1281
    %v1310 = vmul.f32 %v1254, %v1281
    %v1311 = vmul.f32 %v1255, %v1281
    %v1312 = vmul.f32 %v1256, %v1281
    %v1313 = vmul.f32 %v1257, %v1281
    %v1314 = vmul.f32 %v1258, %v1281
    %v1315 = vadd.f32 %v1283, %v1291
    %v1316 = vadd.f32 %v1315, %v1299
    %v1317 = vadd.f32 %v1316, %v1307
    %v1318 = vrot.slane %v1317, 4
    %v1319 = vadd.f32 %v1317, %v1318
    %v1320 = vrot.slane %v1319, 2
    %v1321 = vadd.f32 %v1319, %v1320
    %v1322 = vrot.slane %v1321, 1
    %v1323 = vadd.f32 %v1321, %v1322
    %v1324 = vadd.f32 %v1284, %v1292
    %v1325 = vadd.f32 %v1324, %v1300
    %v1326 = vadd.f32 %v1325, %v1308
    %v1327 = vrot.slane %v1326, 4
    %v1328 = vadd.f32 %v1326, %v1327
    %v1329 = vrot.slane %v1328, 2
    %v1330 = vadd.f32 %v1328, %v1329
    %v1331 = vrot.slane %v1330, 1
    %v1332 = vadd.f32 %v1330, %v1331
    %v1333 = vadd.f32 %v1285, %v1293
    %v1334 = vadd.f32 %v1333, %v1301
    %v1335 = vadd.f32 %v1334, %v1309
    %v1336 = vrot.slane %v1335, 4
    %v1337 = vadd.f32 %v1335, %v1336
    %v1338 = vrot.slane %v1337, 2
    %v1339 = vadd.f32 %v1337, %v1338
    %v1340 = vrot.slane %v1339, 1
    %v1341 = vadd.f32 %v1339, %v1340
    %v1342 = vadd.f32 %v1286, %v1294
    %v1343 = vadd.f32 %v1342, %v1302
    %v1344 = vadd.f32 %v1343, %v1310
    %v1345 = vrot.slane %v1344, 4
    %v1346 = vadd.f32 %v1344, %v1345
    %v1347 = vrot.slane %v1346, 2
    %v1348 = vadd.f32 %v1346, %v1347
    %v1349 = vrot.slane %v1348, 1
    %v1350 = vadd.f32 %v1348, %v1349
    %v1351 = vadd.f32 %v1287, %v1295
    %v1352 = vadd.f32 %v1351, %v1303
    %v1353 = vadd.f32 %v1352, %v1311
    %v1354 = vrot.slane %v1353, 4
    %v1355 = vadd.f32 %v1353, %v1354
    %v1356 = vrot.slane %v1355, 2
    %v1357 = vadd.f32 %v1355, %v1356
    %v1358 = vrot.slane %v1357, 1
    %v1359 = vadd.f32 %v1357, %v1358
    %v1360 = vadd.f32 %v1288, %v1296
    %v1361 = vadd.f32 %v1360, %v1304
    %v1362 = vadd.f32 %v1361, %v1312
    %v1363 = vrot.slane %v1362, 4
    %v1364 = vadd.f32 %v1362, %v1363
    %v1365 = vrot.slane %v1364, 2
    %v1366 = vadd.f32 %v1364, %v1365
    %v1367 = vrot.slane %v1366, 1
    %v1368 = vadd.f32 %v1366, %v1367
    %v1369 = vadd.f32 %v1289, %v1297
    %v1370 = vadd.f32 %v1369, %v1305
    %v1371 = vadd.f32 %v1370, %v1313
    %v1372 = vrot.slane %v1371, 4
    %v1373 = vadd.f32 %v1371, %v1372
    %v1374 = vrot.slane %v1373, 2
    %v1375 = vadd.f32 %v1373, %v1374
    %v1376 = vrot.slane %v1375, 1
    %v1377 = vadd.f32 %v1375, %v1376
    %v1378 = vadd.f32 %v1290, %v1298
    %v1379 = vadd.f32 %v1378, %v1306
    %v1380 = vadd.f32 %v1379, %v1314
    %v1381 = vrot.slane %v1380, 4
    %v1382 = vadd.f32 %v1380, %v1381
    %v1383 = vrot.slane %v1382, 2
    %v1384 = vadd.f32 %v1382, %v1383
    %v1385 = vrot.slane %v1384, 1
    %v1386 = vadd.f32 %v1384, %v1385
    %s1387 = sld [smem:[#allocation2]]
    %v1388 = vstv %s1387
    %v1389 = vadd.f32 %v1323, %v1388
    %v1390 = vadd.f32 %v1332, %v1388
    %v1391 = vadd.f32 %v1341, %v1388
    %v1392 = vadd.f32 %v1350, %v1388
    %v1393 = vadd.f32 %v1359, %v1388
    %v1394 = vadd.f32 %v1368, %v1388
    %v1395 = vadd.f32 %v1377, %v1388
    %v1396 = vadd.f32 %v1386, %v1388
    %v1405 = vcombine.low %v1389, %v1390
    %v1406 = vcombine.low %v1391, %v1392
    %v1407 = vcombine.low %v1393, %v1394
    %v1408 = vcombine.low %v1395, %v1396
    %v1410 = vunpack.c.l.s4 1966171168
    %v1411 = vunpack.c.0.s8 %v1410
    %v1412 = vlaneseq
    %v1413 = vshrl.u32 %v1412, 7
    %v1414 = vsub.s32 %v1411, %v1413
    %v1415 = vrot.slane %v1405, %v1414
    %v1417 = vunpack.c.l.s4 1966171168
    %v1418 = vunpack.c.0.s8 %v1417
    %v1419 = vlaneseq
    %v1420 = vshrl.u32 %v1419, 7
    %v1421 = vsub.s32 %v1418, %v1420
    %v1422 = vrot.slane %v1406, %v1421
    %v1424 = vunpack.c.l.s4 1966171168
    %v1425 = vunpack.c.0.s8 %v1424
    %v1426 = vlaneseq
    %v1427 = vshrl.u32 %v1426, 7
    %v1428 = vsub.s32 %v1425, %v1427
    %v1429 = vrot.slane %v1407, %v1428
    %v1431 = vunpack.c.l.s4 1966171168
    %v1432 = vunpack.c.0.s8 %v1431
    %v1433 = vlaneseq
    %v1434 = vshrl.u32 %v1433, 7
    %v1435 = vsub.s32 %v1432, %v1434
    %v1436 = vrot.slane %v1408, %v1435
    %v1437 = vcombine.low %v1415, %v1422
    %v1438 = vcombine.low %v1429, %v1436
    %v1440 = vunpack.c.l.s4 1966171168
    %v1441 = vunpack.c.0.s8 %v1440
    %v1442 = vlaneseq
    %v1443 = vshrl.u32 %v1442, 7
    %v1444 = vsub.s32 %v1441, %v1443
    %v1445 = vrot.slane %v1437, %v1444
    %v1447 = vunpack.c.l.s4 1966171168
    %v1448 = vunpack.c.0.s8 %v1447
    %v1449 = vlaneseq
    %v1450 = vshrl.u32 %v1449, 7
    %v1451 = vsub.s32 %v1448, %v1450
    %v1452 = vrot.slane %v1438, %v1451
    %v1453 = vcombine.low %v1445, %v1452
    %1455 = vst [vmem:[#allocation3] sm:$0xff] %v1453
    // Predicated region
    $region30: #{tpu_custom_call.1} parent=1 // pred_check
      _
    $region31: #{tpu_custom_call.1} parent=1 // pred_check_branch
      %1457 = sbr.rel (0) target = $region33
    $region32: #{tpu_custom_call.1} parent=1 // pred_region
      %s1459 = ssub.s32 128, 128
      %1460 = vsyncadd [#allocation4], %s1459
      %s1462 = sshll.u32 [#allocation3], 4
      %s1463 = int_to_ptr.vmem [resolvable:$true] %s1462
      %1465 = dma.vmem_to_hbm [thread:$0]  %s1463, 128, %s7, [#allocation4]
    $region33: #{tpu_custom_call.1} parent=1 // pred_fallthru
      _
    // Predicated region
    $region34: #{tpu_custom_call.1} parent=1 // pred_check
      _
    $region35: #{tpu_custom_call.1} parent=1 // pred_check_branch
      %1467 = sbr.rel (0) target = $region37
    $region36: #{tpu_custom_call.1} parent=1 // pred_region
      %1468 = dma.done [#allocation4], 128
    $region37: #{tpu_custom_call.1} parent=1 // pred_fallthru
      _
    %1469 = vsyncpa [#allocation4], 1

</llo_original>
